<compile_context>
chip_gen: v7x
topology: tpu7x:2x2x1
jax: 0.10.0
libtpu: 0.0.40
codegen_flags: <defaults>
</compile_context>

<pallas_src>
import numpy as np
import jax
import jax.numpy as jnp
from jax import lax
from jax.experimental import pallas as pl
from jax.experimental.pallas import tpu as pltpu

N = 1                        # size of the a / b parameter vectors
NCOEF = 4 + N                # _a = [1, 0, 0, 0, a_0, ...]
NPTS = 1000                  # torch.linspace(..., steps=1000)
ROWS, LANES = 8, 128         # one f32 vreg
PADN = ROWS * LANES          # 1024 padded quadrature points
NSCAL = 8                    # scalars per batch element in SMEM
NEWTON_TOL = 1e-3            # TODO(synk): relaxed from 1e-10 (float64 ref) for float32
NEWTON_MAX_STEPS = 50
MAX_CURVE_ITERS = 300        # TODO(synk): safety guard (not in reference)
BISECT_BATCH = 16            # candidates per multisection round in get_L_max

_PI = float(np.pi)
_HALF_PI = float(np.pi / 2.0)
_QUARTER_PI = float(np.pi / 4.0)


# ----------------------------------------------------------------------------
# in-kernel math helpers (complex numbers carried as separate f32 planes)
# ----------------------------------------------------------------------------
def _recip(x):
    # approximate EUP reciprocal + one Newton-Raphson refinement (~1e-7 rel err)
    r = pl.reciprocal(x, approx=True)
    return r * (2.0 - x * r)


def _cmul(ar, ai, br, bi):
    return ar * br - ai * bi, ar * bi + ai * br


def _cinv(br, bi):
    # scaled complex reciprocal (robust for the ~1e16 dL denominator)
    s = _recip(jnp.maximum(jnp.abs(br), jnp.abs(bi)))
    brs = br * s
    bis = bi * s
    inv = _recip(brs * brs + bis * bis)
    return s * brs * inv, -(s * bis * inv)


def _cdiv(ar, ai, br, bi):
    ir, ii = _cinv(br, bi)
    return _cmul(ar, ai, ir, ii)


def _csqrt(ar, ai):
    # principal branch
    m = jnp.sqrt(ar * ar + ai * ai)
    re = jnp.sqrt(jnp.maximum(0.5 * (m + ar), 0.0))
    im = jnp.where(ai >= 0.0, 1.0, -1.0) * jnp.sqrt(jnp.maximum(0.5 * (m - ar), 0.0))
    return re, im


def _atan_unit(t):
    # atan(t), t in [0, 1]: Cephes-style range reduction at tan(pi/8) + odd poly
    big = t > 0.4142135623730950
    x = jnp.where(big, (t - 1.0) * _recip(t + 1.0), t)
    z = x * x
    p = (((8.05374449538e-2 * z - 1.38776856032e-1) * z + 1.99777106478e-1) * z
         - 3.33329491539e-1) * z * x + x
    return jnp.where(big, _QUARTER_PI + p, p)


def _atan2(y, x):
    ax = jnp.abs(x)
    ay = jnp.abs(y)
    swap = ay > ax
    num = jnp.where(swap, ax, ay)
    den = jnp.where(swap, ay, ax)
    t = num * _recip(jnp.maximum(den, 1e-30))
    r = _atan_unit(t)
    r = jnp.where(swap, _HALF_PI - r, r)
    r = jnp.where(x < 0.0, _PI - r, r)
    return jnp.where(y < 0.0, -r, r)


def _clog(ar, ai):
    # principal branch log
    return 0.5 * jnp.log(ar * ar + ai * ai), _atan2(ai, ar)


def _zpow(zr, zi, z2r, z2i, z4r, z4i, k):
    # z^k using precomputed z^2, z^4 (trace-time dispatch)
    if k == 0:
        return jnp.ones_like(zr), jnp.zeros_like(zr)
    if k == 1:
        return zr, zi
    if k == 2:
        return z2r, z2i
    if k == 3:
        return _cmul(z2r, z2i, zr, zi)
    pr, pi_ = z4r, z4i
    for _ in range(k - 4):
        pr, pi_ = _cmul(pr, pi_, zr, zi)
    return pr, pi_


def _eval_f_pa(zr, zi, z2r, z2i, z4r, z4i, lgr, lgi, ac):
    """f(z) and pa(z) = sum_i a_i z^i, sharing the power ladder.
       f(z) = sum_{i!=4} 4 a_i (z^4 - z^i)/(i-4) - 4 a_4 z^4 log(z)."""
    fr = jnp.zeros_like(zr)
    fi = jnp.zeros_like(zr)
    par = jnp.zeros_like(zr)
    pai = jnp.zeros_like(zr)
    for i, ci in enumerate(ac):
        if ci == 0.0:
            continue
        pr, pi_ = _zpow(zr, zi, z2r, z2i, z4r, z4i, i)
        par = par + ci * pr
        pai = pai + ci * pi_
        if i == 4:
            tr, ti = _cmul(z4r, z4i, lgr, lgi)
            fr = fr - (4.0 * ci) * tr
            fi = fi - (4.0 * ci) * ti
        else:
            c = 4.0 * ci / (i - 4.0)
            fr = fr + c * (z4r - pr)
            fi = fi + c * (z4i - pi_)
    return fr, fi, par, pai


def _eval_b_zdb(zr, zi, z2r, z2i, z4r, z4i, bc, need_zdb):
    """b(z) = sum_i b_i z^i and z*b'(z) = sum_i i b_i z^i."""
    br = jnp.zeros_like(zr)
    bi_ = jnp.zeros_like(zr)
    zdbr = jnp.zeros_like(zr)
    zdbi = jnp.zeros_like(zr)
    for i, ci in enumerate(bc):
        if ci == 0.0:
            continue
        pr, pi_ = _zpow(zr, zi, z2r, z2i, z4r, z4i, i)
        br = br + ci * pr
        bi_ = bi_ + ci * pi_
        if need_zdb and i > 0:
            zdbr = zdbr + (i * ci) * pr
            zdbi = zdbi + (i * ci) * pi_
    return br, bi_, zdbr, zdbi


def _write4(out_ref, v0, v1, v2, v3):
    # out block is (1, 8, 128); the four sums land in lanes 0..3 (host reads row 0)
    lane = lax.broadcasted_iota(jnp.int32, (ROWS, LANES), 1)
    vals = jnp.where(lane == 0, v0,
           jnp.where(lane == 1, v1,
           jnp.where(lane == 2, v2,
           jnp.where(lane == 3, v3, 0.0))))
    out_ref[0] = vals


# ----------------------------------------------------------------------------
# fused Pallas kernels (coefficients baked in as trace-time constants)
# ----------------------------------------------------------------------------
def _make_ldl_kernel(acoef, bcoef):
    ac = [float(c) for c in acoef]
    bc = [float(c) for c in bcoef]

    def kernel(scal_ref, y_ref, w_ref, out_ref):
        bidx = pl.program_id(0)
        zsr = scal_ref[bidx, 0]
        zsi = scal_ref[bidx, 1]
        ifsr = scal_ref[bidx, 2]        # 1 / f(zs)       (host, complex128 -> f32)
        ifsi = scal_ref[bidx, 3]
        qr = scal_ref[bidx, 4]          # zs f'(zs)/f(zs)
        qi = scal_ref[bidx, 5]

        y = y_ref[...]
        w = w_ref[...]
        yw = y * w                      # integrands carry an explicit * y
        u = (1.0 - y) * (1.0 + y)
        zr = zsr * u
        zi = zsi * u

        # shared pieces (computed once for both L and dL)
        z2r, z2i = _cmul(zr, zi, zr, zi)
        z4r, z4i = _cmul(z2r, z2i, z2r, z2i)
        lgr, lgi = _clog(zr, zi)
        fr, fi, par, pai = _eval_f_pa(zr, zi, z2r, z2i, z4r, z4i, lgr, lgi, ac)
        br, bi_, zdbr, zdbi = _eval_b_zdb(zr, zi, z2r, z2i, z4r, z4i, bc, True)
        idr, idi = _cinv(1.0 - z4r, -z4i)            # 1/(1 - z^4)
        gr, gi = _cmul(br, bi_, idr, idi)            # g(z)
        sgr, sgi = _csqrt(gr, gi)
        ffr, ffi = _cmul(fr, fi, ifsr, ifsi)         # f(z)/f(zs)
        u2 = u * u
        inv_u4 = _recip(u2 * u2)                     # == zs^4/z^4 (exact in y)
        p_r = inv_u4 * ffr                           # p = zs^4/z^4 * f/fs
        p_i = inv_u4 * ffi
        tm1r = p_r - 1.0
        tm1i = p_i
        sqr, sqi = _csqrt(tm1r, tm1i)                # sqrt(p - 1)

        # ---------------- L ----------------
        lr, li = _cdiv(sgr, sgi, sqr, sqi)
        L_re = jnp.sum(lr * yw)
        L_im = jnp.sum(li * yw)

        # ---------------- dL ----------------
        rb_r, rb_i = _cdiv(zdbr, zdbi, br, bi_)      # z b'(z)/b(z)
        t4r, t4i = _cmul(z4r, z4i, idr, idi)         # z^4/(1 - z^4)
        zgr = 4.0 * t4r + rb_r                       # z g'(z)/g(z)
        zgi = 4.0 * t4i + rb_i
        # A - B = zs^4/z^4 / f(zs) * ( f(z)*(q - 2 + z g'/g) + 4*pa(z) )
        mr, mi = _cmul(fr, fi, (qr - 2.0) + zgr, qi + zgi)
        mr = mr + 4.0 * par
        mi = mi + 4.0 * pai
        abr, abi = _cmul(mr, mi, ifsr, ifsi)
        abr = abr * inv_u4
        abi = abi * inv_u4
        numr = abr - 2.0 - zgr
        numi = abi - zgi
        d15r, d15i = _cmul(tm1r, tm1i, sqr, sqi)     # (p - 1)^1.5
        m2r, m2i = _cdiv(2.0 * sgr, 2.0 * sgi, d15r, d15i)   # 2 sqrt(g)/(p-1)^1.5
        dr_, di_ = _cmul(numr, numi, m2r, m2i)
        dL_re = jnp.sum(dr_ * yw)                    # remaining 2*sqrt(1-z/zs) == 2*y
        dL_im = jnp.sum(di_ * yw)

        _write4(out_ref, L_re, L_im, dL_re, dL_im)

    return kernel


def _make_v_kernel(acoef, bcoef):
    ac = [float(c) for c in acoef]
    bc = [float(c) for c in bcoef]

    def kernel(scal_ref, ym_ref, wm_ref, yd_ref, wd_ref, out_ref):
        bidx = pl.program_id(0)
        zsr = scal_ref[bidx, 0]
        zsi = scal_ref[bidx, 1]
        ifsr = scal_ref[bidx, 2]
        ifsi = scal_ref[bidx, 3]

        # ------------- connected (y in [0.001, 0.999]) -------------
        y = ym_ref[...]
        w = wm_ref[...]
        u = (1.0 - y) * (1.0 + y)
        zr = zsr * u
        zi = zsi * u
        z2r, z2i = _cmul(zr, zi, zr, zi)
        z4r, z4i = _cmul(z2r, z2i, z2r, z2i)
        lgr, lgi = _clog(zr, zi)
        fr, fi, _, _ = _eval_f_pa(zr, zi, z2r, z2i, z4r, z4i, lgr, lgi, ac)
        br, bi_, _, _ = _eval_b_zdb(zr, zi, z2r, z2i, z4r, z4i, bc, False)
        idr, idi = _cinv(1.0 - z4r, -z4i)
        gr, gi = _cmul(br, bi_, idr, idi)
        fgr, fgi = _cmul(fr, fi, gr, gi)
        sfgr, sfgi = _csqrt(fgr, fgi)
        ffr, ffi = _cmul(fr, fi, ifsr, ifsi)          # f/fs
        iffr, iffi = _cinv(ffr, ffi)                  # fs/f
        u2 = u * u
        u4 = u2 * u2
        rr = u4 * iffr                                # (1-y)^4 (1+y)^4 / (f/fs)
        ri = u4 * iffi
        s1r, s1i = _csqrt(1.0 - rr, -ri)
        is1r, is1i = _cinv(s1r, s1i)
        cr, ci_ = _cmul(sfgr, sfgi, is1r - 1.0, is1i)
        sw = _recip(u2) * y * w
        Vc_re = jnp.sum(cr * sw)
        Vc_im = jnp.sum(ci_ * sw)

        # ------------- disconnected (y in [0.001, 1]) -------------
        yd = yd_ref[...]
        wd = wd_ref[...]
        zrd = 1.0 - (1.0 - zsr) * yd
        zid = zsi * yd
        z2rd, z2id = _cmul(zrd, zid, zrd, zid)
        z4rd, z4id = _cmul(z2rd, z2id, z2rd, z2id)
        lgrd, lgid = _clog(zrd, zid)
        frd, fid, _, _ = _eval_f_pa(zrd, zid, z2rd, z2id, z4rd, z4id, lgrd, lgid, ac)
        brd, bid_, _, _ = _eval_b_zdb(zrd, zid, z2rd, z2id, z4rd, z4id, bc, False)
        idrd, idid = _cinv(1.0 - z4rd, -z4id)
        grd, gid = _cmul(brd, bid_, idrd, idid)
        fgrd, fgid = _cmul(frd, fid, grd, gid)
        sfgrd, sfgid = _csqrt(fgrd, fgid)
        dvr, dvi = _cdiv(sfgrd, sfgid, z2rd, z2id)    # sqrt(fg)/z^2
        Vd_re = jnp.sum(dvr * wd)
        Vd_im = jnp.sum(dvi * wd)

        _write4(out_ref, Vc_re, Vc_im, Vd_re, Vd_im)

    return kernel


# ----------------------------------------------------------------------------
# batched pallas_call runner: grid=(B,), per-candidate scalars in SMEM
# ----------------------------------------------------------------------------
def _make_runner(kernel, vmem_consts):
    consts = [jnp.asarray(np.asarray(v, np.float32).reshape(ROWS, LANES))
              for v in vmem_consts]
    n_consts = len(consts)
    cache = {}

    def _build(B):
        in_specs = [pl.BlockSpec(memory_space=pltpu.MemorySpace.SMEM)]   # (B, NSCAL)
        in_specs += [pl.BlockSpec((ROWS, LANES), lambda b: (0, 0))
                     for _ in range(n_consts)]
        call = pl.pallas_call(
            kernel,
            out_shape=jax.ShapeDtypeStruct((B, ROWS, LANES), jnp.float32),
            grid=(B,),
            in_specs=in_specs,
            out_specs=pl.BlockSpec((1, ROWS, LANES), lambda b: (b, 0, 0)),
            compiler_params=pltpu.CompilerParams(
                dimension_semantics=("parallel",)),   # shards the batch on v7x megacore
        )
        return jax.jit(lambda scal: call(scal, *consts))

    def run(scal_np):
        scal_np = np.ascontiguousarray(scal_np, np.float32)
        B = scal_np.shape[0]
        if B not in cache:
            cache[B] = _build(B)
        out = np.asarray(jax.block_until_ready(cache[B](jnp.asarray(scal_np))))
        return out[:, 0, :4]          # (B, 4): [re0, im0, re1, im1]

    return run


# ----------------------------------------------------------------------------
# trapezoid weights reproducing the reference's prepend/append + torch.trapz
# ----------------------------------------------------------------------------
def _main_grid_weights():
    # y = linspace(0.001, 0.999, 1000); prepend linear extrapolation at y=0,
    # append 0 at y=1; exact trapezoid weights on the 1000 samples.
    y = np.linspace(0.001, 0.999, NPTS)
    h = (y[-1] - y[0]) / (NPTS - 1)
    w = np.full(NPTS, h)
    w[0] = 0.5 * h
    w[-1] = 0.5 * h
    y0 = y[0]
    w[0] += y0 + 0.5 * y0 * y0 / h          # [0, y0] interval with extrapolated I(0)
    w[1] -= 0.5 * y0 * y0 / h
    w[-1] += 0.5 * (1.0 - y[-1])            # [y_last, 1] interval with appended 0
    return y, w


def _disc_grid_weights():
    # y = linspace(0.001, 1, 1000); prepend the constant 1.0 at y=0.
    y = np.linspace(0.001, 1.0, NPTS)
    h = (y[-1] - y[0]) / (NPTS - 1)
    w = np.full(NPTS, h)
    w[0] = 0.5 * h
    w[-1] = 0.5 * h
    w[0] += 0.5 * y[0]
    const = 0.5 * y[0]                      # 0.5*y0*1.0 from the prepended constant
    return y, w, const


def _pad_plane(v, fill):
    out = np.concatenate([v, np.full(PADN - NPTS, fill)])
    return out.astype(np.float32).reshape(ROWS, LANES)


# ----------------------------------------------------------------------------
# host-side model (root finding / curve construction stay on the host)
# ----------------------------------------------------------------------------
class AdSBHNet:
    def __init__(self, a, b, logcoef=0.0, shift=0.0):
        self.a = np.asarray(a, np.float64).reshape(N)
        self.b = np.asarray(b, np.float64).reshape(N)
        self.logcoef = float(logcoef)
        self.shift = float(shift)            # unused in forward (as in reference)
        self._acoef = np.concatenate(([1.0], np.zeros(3), self.a))
        self._bcoef = np.concatenate(([1.0], np.zeros(3), self.b))
        self.ab = np.sqrt((1.0 + self.a.sum()) / (1.0 + self.b.sum()))
        self.ba = np.sqrt((1.0 + self.b.sum()) / (1.0 + self.a.sum()))

        y_m, w_m = _main_grid_weights()
        y_d, w_d, self._vd_const = _disc_grid_weights()
        ym = _pad_plane(y_m, y_m[-1])
        wm = _pad_plane(w_m, 0.0)
        yd = _pad_plane(y_d, y_d[-1])
        wd = _pad_plane(w_d, 0.0)

        self._run_ldl = _make_runner(_make_ldl_kernel(self._acoef, self._bcoef),
                                     [ym, wm])
        self._run_v = _make_runner(_make_v_kernel(self._acoef, self._bcoef),
                                   [ym, wm, yd, wd])

        self.curve_L = None
        self.curve_zs = None

    # ---- host scalar helpers (exact complex128 prefactors) ----
    def _f_host(self, z):
        z = np.complex128(z)
        out = 0.0 + 0.0j
        for i, ci in enumerate(self._acoef):
            if i == 4:
                out += -4.0 * ci * z ** 4 * np.log(z)
            else:
                out += 4.0 * ci * (z ** 4 - z ** i) / (i - 4.0)
        return out

    def _df_host(self, z):
        z = np.complex128(z)
        out = 0.0 + 0.0j
        for i, ci in enumerate(self._acoef):
            out += -4.0 * ci * z ** i
        out += 4.0 * self._f_host(z)
        return out / z

    # ---- positivity checks ----
    def check_positive_a(self):
        zg = np.linspace(0, 0.999, 1000)
        grid = sum(ci * zg ** i for i, ci in enumerate(self._acoef))
        assert np.all(grid > 0), 'a(z) is not positive.'

    def check_positive_b(self):
        zg = np.linspace(0, 0.999, 1000)
        grid = sum(ci * zg ** i for i, ci in enumerate(self._bcoef))
        assert np.all(grid > 0), 'b(z) is not positive.'

    # ---- batched device evaluations (one pallas_call per batch) ----
    def _ldl_batch(self, zs_batch):
        zs = np.atleast_1d(np.asarray(zs_batch, np.complex128))
        B = zs.shape[0]
        scal = np.zeros((B, NSCAL), np.float32)
        for i, z in enumerate(zs):
            fs = self._f_host(z)
            ifs = 1.0 / fs
            q = z * self._df_host(z) / fs
            scal[i, 0:6] = [z.real, z.imag, ifs.real, ifs.imag, q.real, q.imag]
        out = self._run_ldl(scal).astype(np.float64)
        S_L = out[:, 0] + 1j * out[:, 1]
        S_dL = out[:, 2] + 1j * out[:, 3]
        L = 4.0 * zs * S_L / np.pi * self.ab
        dL = S_dL / np.pi * self.ab
        return L, dL

    def _v_batch(self, zs_batch):
        zs = np.atleast_1d(np.asarray(zs_batch, np.complex128))
        B = zs.shape[0]
        scal = np.zeros((B, NSCAL), np.float32)
        for i, z in enumerate(zs):
            fs = self._f_host(z)
            ifs = 1.0 / fs
            scal[i, 0:4] = [z.real, z.imag, ifs.real, ifs.imag]
        out = self._run_v(scal).astype(np.float64)
        S_c = out[:, 0] + 1j * out[:, 1]
        S_d = out[:, 2] + 1j * out[:, 3] + self._vd_const
        coef = np.exp(self.logcoef)
        V_c = coef * np.pi * 4.0 * S_c / zs * self.ba
        V_d = coef * np.pi * 2.0 * (1.0 - zs) * S_d * self.ba
        return V_c - V_d

    # ---- reference-style single-point wrappers ----
    def integrate_L(self, zs):
        L = complex(self._ldl_batch([zs])[0][0])
        assert not np.isnan(L), f'integrate_L({zs}) = {L}'
        return L

    def integrate_dL(self, zs):
        dL = complex(self._ldl_batch([zs])[1][0])
        assert not np.isnan(dL), f'integrate_dL({zs}) = {dL}'
        return dL

    def integrate_V(self, zs):
        V = complex(self._v_batch([zs])[0])
        assert not np.isnan(V), f'integrate_V({zs}) = {V}'
        return V

    # ---- Newton (one fused L+dL call per iteration) ----
    def find_zs_newton(self, L, init, max_steps=NEWTON_MAX_STEPS):
        zs = np.complex128(init)
        Lb, dLb = self._ldl_batch([zs])
        L_cur, dL_cur = Lb[0], dLb[0]
        diff = None
        for _ in range(max_steps):
            zs_new = zs - (L_cur - L) / dL_cur
            assert np.abs(zs_new) < 100 and not np.isnan(zs_new), \
                'Something wrong in Newton'
            Lb, dLb = self._ldl_batch([zs_new])
            L_cur, dL_cur = Lb[0], dLb[0]
            zs = zs_new
            diff = np.abs(L_cur - L)
            if diff < NEWTON_TOL:
                return zs
        raise AssertionError(f"Newton failed for L = {L} (diff = {diff})")

    # ---- maximum of the real L(zs) curve via batched multisection ----
    def get_L_max(self):
        lo, hi = 0.001, 0.999
        first = True
        while hi - lo > 1e-8:
            pts = np.linspace(lo, hi, BISECT_BATCH)
            _, dL = self._ldl_batch(pts)
            d = dL.real
            assert not np.any(np.isnan(d)), 'nan in integrate_dL during bracketing'
            if first:
                assert d[0] > 0 and d[-1] < 0
                first = False
            k = max(int(np.argmax(d < 0)), 1)        # first point with dL < 0
            lo, hi = float(pts[k - 1]), float(pts[k])
        zs_mid = 0.5 * (lo + hi)
        L_max = self._ldl_batch([zs_mid])[0][0]
        assert abs(L_max.imag) < 1e-2                # TODO(synk): relaxed from 1e-8
        return complex(zs_mid, 0.0), float(L_max.real)

    # ---- curve construction (sequential host loop, fused kernels inside) ----
    def find_curve(self, L_high):
        zs_max, L_max = self.get_L_max()
        self.curve_L = [0.0, L_max]
        self.curve_zs = [complex(0.0, 0.0), zs_max]
        L_step_default = (L_high - L_max) / 50.0
        L_step = L_step_default
        iters = 0
        while True:
            iters += 1
            if iters > MAX_CURVE_ITERS:
                break
            L = self.curve_L[-1] + L_step
            if abs(self.curve_zs[-1].imag) < 1e-8:
                init = self.curve_zs[-1] + 0.1j
            else:
                init = self.curve_zs[-1]
            try:
                _zs = self.find_zs_newton(L, init)
            except AssertionError:
                break
            zs = complex(_zs.real, abs(_zs.imag) if L > L_max else 0.0)
            if abs(zs - self.curve_zs[-1]) > 0.1:
                L_step /= 2
            else:
                self.curve_zs.append(zs)
                self.curve_L.append(L)
                L_step = L_step_default
            if self.curve_L[-1] > L_high:
                break

    # ---- forward: L -> V(L), NaN where the computation fails ----
    def forward(self, Ls):
        self.check_positive_a()
        self.check_positive_b()
        Ls = np.asarray(Ls, np.float64)
        self.find_curve(float(Ls.max()))
        n = Ls.shape[0]
        V = np.full(n, complex('nan'), np.complex128)
        cL = np.asarray(self.curve_L, np.float64)
        czs = np.asarray(self.curve_zs, np.complex128)

        active = Ls <= cL[-1]
        if not np.any(active):
            return V
        zs = np.full(n, 0.5 + 0.0j, np.complex128)
        zs[active] = (np.interp(Ls[active], cL, czs.real)
                      + 1j * np.interp(Ls[active], cL, czs.imag))

        # batched Newton: every L steps simultaneously, one fused call per step
        converged = np.zeros(n, bool)
        failed = ~active
        with np.errstate(all='ignore'):
            L_cur, dL_cur = self._ldl_batch(zs)
            for _ in range(NEWTON_MAX_STEPS):
                work = active & ~converged & ~failed
                if not np.any(work):
                    break
                zs_new = np.where(work, zs - (L_cur - Ls) / dL_cur, zs)
                bad = work & ((np.abs(zs_new) >= 100.0) | np.isnan(zs_new))
                failed |= bad
                work &= ~bad
                if not np.any(work):
                    break
                zs = np.where(work, zs_new, zs)
                L_new, dL_new = self._ldl_batch(zs)
                L_cur = np.where(work, L_new, L_cur)
                dL_cur = np.where(work, dL_new, dL_cur)
                converged |= work & (np.abs(L_cur - Ls) < NEWTON_TOL)
        failed |= active & ~converged

        ok = converged & ~failed
        if np.any(ok):
            zs_fin = np.where(ok, zs.real + 1j * np.abs(zs.imag), 0.5 + 0.0j)
            ok &= zs_fin.real > 0                     # reference: assert zs.real > 0
            if np.any(ok):
                Vb = self._v_batch(zs_fin)            # one batched Vc+Vd call
                V = np.where(ok, Vb, V)
        return V


# ----------------------------------------------------------------------------
if __name__ == "__main__":
    # deterministic parameters (mild deformation of pure AdS so a(z), b(z) > 0)
    a_param = np.array([0.12], np.float64)
    b_param = np.array([-0.08], np.float64)
    model = AdSBHNet(a_param, b_param, logcoef=0.0, shift=0.0)

    # deterministic example input: 8 quark-antiquark separations T*L
    key = jax.random.PRNGKey(0)
    Ls = np.sort(np.asarray(0.05 + 0.4 * jax.random.uniform(key, (8,), dtype=jnp.float32),
                            np.float64))

    V = model.forward(Ls)
    V_dev = jax.block_until_ready(jnp.asarray(V))
    print("KERNEL_OK")
</pallas_src>

<mosaic_0001>
module attributes {stable_mosaic.version = 11 : i64} {
  func.func @kernel(%arg0: i32, %arg1: memref<16x8xf32, #tpu.memory_space<smem>>, %arg2: memref<8x128xf32, #tpu.memory_space<vmem>>, %arg3: memref<8x128xf32, #tpu.memory_space<vmem>>, %arg4: memref<1x8x128xf32, #tpu.memory_space<vmem>>) attributes {dimension_semantics = [#tpu.dimension_semantics<parallel>], iteration_bounds = array<i64: 16>, scalar_prefetch = 0 : i64, scratch_operands = 0 : i64, tpu.core_type = #tpu.core_type<tc>, window_params = [{transform_indices = @transform_0, window_bounds = array<i64: 16, 8>}, {pipeline_mode = #tpu.pipeline_mode<synchronous>, transform_indices = @transform_1, window_bounds = array<i64: 8, 128>}, {pipeline_mode = #tpu.pipeline_mode<synchronous>, transform_indices = @transform_2, window_bounds = array<i64: 8, 128>}, {transform_indices = @transform_3, window_bounds = array<i64: 1, 8, 128>}]} {
    %0 = arith.index_cast %arg0 : i32 to index
    %c0 = arith.constant 0 : index
    %1 = memref.load %arg1[%0, %c0] : memref<16x8xf32, #tpu.memory_space<smem>>
    %2 = arith.index_cast %arg0 : i32 to index
    %c1 = arith.constant 1 : index
    %3 = memref.load %arg1[%2, %c1] : memref<16x8xf32, #tpu.memory_space<smem>>
    %4 = arith.index_cast %arg0 : i32 to index
    %c2 = arith.constant 2 : index
    %5 = memref.load %arg1[%4, %c2] : memref<16x8xf32, #tpu.memory_space<smem>>
    %6 = arith.index_cast %arg0 : i32 to index
    %c3 = arith.constant 3 : index
    %7 = memref.load %arg1[%6, %c3] : memref<16x8xf32, #tpu.memory_space<smem>>
    %8 = arith.index_cast %arg0 : i32 to index
    %c4 = arith.constant 4 : index
    %9 = memref.load %arg1[%8, %c4] : memref<16x8xf32, #tpu.memory_space<smem>>
    %10 = arith.index_cast %arg0 : i32 to index
    %c5 = arith.constant 5 : index
    %11 = memref.load %arg1[%10, %c5] : memref<16x8xf32, #tpu.memory_space<smem>>
    %c0_0 = arith.constant 0 : index
    %c0_1 = arith.constant 0 : index
    %12 = vector.load %arg2[%c0_0, %c0_1] : memref<8x128xf32, #tpu.memory_space<vmem>>, vector<8x128xf32>
    %c0_2 = arith.constant 0 : index
    %c0_3 = arith.constant 0 : index
    %13 = vector.load %arg3[%c0_2, %c0_3] : memref<8x128xf32, #tpu.memory_space<vmem>>, vector<8x128xf32>
    %14 = arith.mulf %12, %13 : vector<8x128xf32>
    %cst = arith.constant 1.000000e+00 : f32
    %15 = vector.broadcast %cst : f32 to vector<8x128xf32>
    %16 = arith.subf %15, %12 : vector<8x128xf32>
    %cst_4 = arith.constant 1.000000e+00 : f32
    %17 = vector.broadcast %cst_4 : f32 to vector<8x128xf32>
    %18 = arith.addf %17, %12 : vector<8x128xf32>
    %19 = arith.mulf %16, %18 : vector<8x128xf32>
    %20 = vector.broadcast %1 : f32 to vector<8x128xf32>
    %21 = arith.mulf %20, %19 : vector<8x128xf32>
    %22 = vector.broadcast %3 : f32 to vector<8x128xf32>
    %23 = arith.mulf %22, %19 : vector<8x128xf32>
    %24 = arith.mulf %21, %21 : vector<8x128xf32>
    %25 = arith.mulf %23, %23 : vector<8x128xf32>
    %26 = arith.subf %24, %25 : vector<8x128xf32>
    %27 = arith.mulf %21, %23 : vector<8x128xf32>
    %28 = arith.mulf %23, %21 : vector<8x128xf32>
    %29 = arith.addf %27, %28 : vector<8x128xf32>
    %30 = arith.mulf %26, %26 : vector<8x128xf32>
    %31 = arith.mulf %29, %29 : vector<8x128xf32>
    %32 = arith.subf %30, %31 : vector<8x128xf32>
    %33 = arith.mulf %26, %29 : vector<8x128xf32>
    %34 = arith.mulf %29, %26 : vector<8x128xf32>
    %35 = arith.addf %33, %34 : vector<8x128xf32>
    %36 = arith.mulf %21, %21 : vector<8x128xf32>
    %37 = arith.mulf %23, %23 : vector<8x128xf32>
    %38 = arith.addf %36, %37 : vector<8x128xf32>
    %39 = math.log %38 : vector<8x128xf32>
    %cst_5 = arith.constant 5.000000e-01 : f32
    %40 = vector.broadcast %cst_5 : f32 to vector<8x128xf32>
    %41 = arith.mulf %40, %39 : vector<8x128xf32>
    %42 = math.absf %21 : vector<8x128xf32>
    %43 = math.absf %23 : vector<8x128xf32>
    %44 = arith.cmpf ogt, %43, %42 : vector<8x128xf32>
    %45 = arith.select %44, %42, %43 : vector<8x128xi1>, vector<8x128xf32>
    %46 = arith.select %44, %43, %42 : vector<8x128xi1>, vector<8x128xf32>
    %cst_6 = arith.constant 1.000000e-30 : f32
    %47 = vector.broadcast %cst_6 : f32 to vector<8x128xf32>
    %48 = arith.maximumf %46, %47 : vector<8x128xf32>
    %49 = tpu.reciprocal %48 {approx = true} : vector<8x128xf32> -> vector<8x128xf32>
    %50 = arith.mulf %48, %49 : vector<8x128xf32>
    %cst_7 = arith.constant 2.000000e+00 : f32
    %51 = vector.broadcast %cst_7 : f32 to vector<8x128xf32>
    %52 = arith.subf %51, %50 : vector<8x128xf32>
    %53 = arith.mulf %49, %52 : vector<8x128xf32>
    %54 = arith.mulf %45, %53 : vector<8x128xf32>
    %cst_8 = arith.constant 0.414213568 : f32
    %55 = vector.broadcast %cst_8 : f32 to vector<8x128xf32>
    %56 = arith.cmpf ogt, %54, %55 : vector<8x128xf32>
    %cst_9 = arith.constant 1.000000e+00 : f32
    %57 = vector.broadcast %cst_9 : f32 to vector<8x128xf32>
    %58 = arith.subf %54, %57 : vector<8x128xf32>
    %cst_10 = arith.constant 1.000000e+00 : f32
    %59 = vector.broadcast %cst_10 : f32 to vector<8x128xf32>
    %60 = arith.addf %54, %59 : vector<8x128xf32>
    %61 = tpu.reciprocal %60 {approx = true} : vector<8x128xf32> -> vector<8x128xf32>
    %62 = arith.mulf %60, %61 : vector<8x128xf32>
    %cst_11 = arith.constant 2.000000e+00 : f32
    %63 = vector.broadcast %cst_11 : f32 to vector<8x128xf32>
    %64 = arith.subf %63, %62 : vector<8x128xf32>
    %65 = arith.mulf %61, %64 : vector<8x128xf32>
    %66 = arith.mulf %58, %65 : vector<8x128xf32>
    %67 = arith.select %56, %66, %54 : vector<8x128xi1>, vector<8x128xf32>
    %68 = arith.mulf %67, %67 : vector<8x128xf32>
    %cst_12 = arith.constant 0.0805374458 : f32
    %69 = vector.broadcast %cst_12 : f32 to vector<8x128xf32>
    %70 = arith.mulf %69, %68 : vector<8x128xf32>
    %cst_13 = arith.constant 0.138776854 : f32
    %71 = vector.broadcast %cst_13 : f32 to vector<8x128xf32>
    %72 = arith.subf %70, %71 : vector<8x128xf32>
    %73 = arith.mulf %72, %68 : vector<8x128xf32>
    %cst_14 = arith.constant 0.199777111 : f32
    %74 = vector.broadcast %cst_14 : f32 to vector<8x128xf32>
    %75 = arith.addf %73, %74 : vector<8x128xf32>
    %76 = arith.mulf %75, %68 : vector<8x128xf32>
    %cst_15 = arith.constant 0.333329499 : f32
    %77 = vector.broadcast %cst_15 : f32 to vector<8x128xf32>
    %78 = arith.subf %76, %77 : vector<8x128xf32>
    %79 = arith.mulf %78, %68 : vector<8x128xf32>
    %80 = arith.mulf %79, %67 : vector<8x128xf32>
    %81 = arith.addf %80, %67 : vector<8x128xf32>
    %cst_16 = arith.constant 0.785398185 : f32
    %82 = vector.broadcast %cst_16 : f32 to vector<8x128xf32>
    %83 = arith.addf %82, %81 : vector<8x128xf32>
    %84 = arith.select %56, %83, %81 : vector<8x128xi1>, vector<8x128xf32>
    %cst_17 = arith.constant 1.57079637 : f32
    %85 = vector.broadcast %cst_17 : f32 to vector<8x128xf32>
    %86 = arith.subf %85, %84 : vector<8x128xf32>
    %87 = arith.select %44, %86, %84 : vector<8x128xi1>, vector<8x128xf32>
    %cst_18 = arith.constant 0.000000e+00 : f32
    %88 = vector.broadcast %cst_18 : f32 to vector<8x128xf32>
    %89 = arith.cmpf olt, %21, %88 : vector<8x128xf32>
    %cst_19 = arith.constant 3.14159274 : f32
    %90 = vector.broadcast %cst_19 : f32 to vector<8x128xf32>
    %91 = arith.subf %90, %87 : vector<8x128xf32>
    %92 = arith.select %89, %91, %87 : vector<8x128xi1>, vector<8x128xf32>
    %cst_20 = arith.constant 0.000000e+00 : f32
    %93 = vector.broadcast %cst_20 : f32 to vector<8x128xf32>
    %94 = arith.cmpf olt, %23, %93 : vector<8x128xf32>
    %cst_21 = arith.constant 0.000000e+00 : f32
    %95 = vector.broadcast %cst_21 : f32 to vector<8x128xf32>
    %96 = arith.subf %95, %92 : vector<8x128xf32>
    %97 = arith.select %94, %96, %92 : vector<8x128xi1>, vector<8x128xf32>
    %cst_22 = arith.constant 0.000000e+00 : f32
    %98 = vector.broadcast %cst_22 : f32 to vector<8x128xf32>
    %cst_23 = arith.constant 0.000000e+00 : f32
    %99 = vector.broadcast %cst_23 : f32 to vector<8x128xf32>
    %cst_24 = arith.constant 0.000000e+00 : f32
    %100 = vector.broadcast %cst_24 : f32 to vector<8x128xf32>
    %cst_25 = arith.constant 0.000000e+00 : f32
    %101 = vector.broadcast %cst_25 : f32 to vector<8x128xf32>
    %cst_26 = arith.constant 1.000000e+00 : f32
    %102 = vector.broadcast %cst_26 : f32 to vector<8x128xf32>
    %cst_27 = arith.constant 0.000000e+00 : f32
    %103 = vector.broadcast %cst_27 : f32 to vector<8x128xf32>
    %cst_28 = arith.constant 1.000000e+00 : f32
    %104 = vector.broadcast %cst_28 : f32 to vector<8x128xf32>
    %105 = arith.mulf %104, %102 : vector<8x128xf32>
    %106 = arith.addf %100, %105 : vector<8x128xf32>
    %cst_29 = arith.constant 1.000000e+00 : f32
    %107 = vector.broadcast %cst_29 : f32 to vector<8x128xf32>
    %108 = arith.mulf %107, %103 : vector<8x128xf32>
    %109 = arith.addf %101, %108 : vector<8x128xf32>
    %110 = arith.subf %32, %102 : vector<8x128xf32>
    %cst_30 = arith.constant -1.000000e+00 : f32
    %111 = vector.broadcast %cst_30 : f32 to vector<8x128xf32>
    %112 = arith.mulf %111, %110 : vector<8x128xf32>
    %113 = arith.addf %98, %112 : vector<8x128xf32>
    %114 = arith.subf %35, %103 : vector<8x128xf32>
    %cst_31 = arith.constant -1.000000e+00 : f32
    %115 = vector.broadcast %cst_31 : f32 to vector<8x128xf32>
    %116 = arith.mulf %115, %114 : vector<8x128xf32>
    %117 = arith.addf %99, %116 : vector<8x128xf32>
    %cst_32 = arith.constant 1.200000e-01 : f32
    %118 = vector.broadcast %cst_32 : f32 to vector<8x128xf32>
    %119 = arith.mulf %118, %32 : vector<8x128xf32>
    %120 = arith.addf %106, %119 : vector<8x128xf32>
    %cst_33 = arith.constant 1.200000e-01 : f32
    %121 = vector.broadcast %cst_33 : f32 to vector<8x128xf32>
    %122 = arith.mulf %121, %35 : vector<8x128xf32>
    %123 = arith.addf %109, %122 : vector<8x128xf32>
    %124 = arith.mulf %32, %41 : vector<8x128xf32>
    %125 = arith.mulf %35, %97 : vector<8x128xf32>
    %126 = arith.subf %124, %125 : vector<8x128xf32>
    %127 = arith.mulf %32, %97 : vector<8x128xf32>
    %128 = arith.mulf %35, %41 : vector<8x128xf32>
    %129 = arith.addf %127, %128 : vector<8x128xf32>
    %cst_34 = arith.constant 4.800000e-01 : f32
    %130 = vector.broadcast %cst_34 : f32 to vector<8x128xf32>
    %131 = arith.mulf %130, %126 : vector<8x128xf32>
    %132 = arith.subf %113, %131 : vector<8x128xf32>
    %cst_35 = arith.constant 4.800000e-01 : f32
    %133 = vector.broadcast %cst_35 : f32 to vector<8x128xf32>
    %134 = arith.mulf %133, %129 : vector<8x128xf32>
    %135 = arith.subf %117, %134 : vector<8x128xf32>
    %cst_36 = arith.constant 0.000000e+00 : f32
    %136 = vector.broadcast %cst_36 : f32 to vector<8x128xf32>
    %cst_37 = arith.constant 0.000000e+00 : f32
    %137 = vector.broadcast %cst_37 : f32 to vector<8x128xf32>
    %cst_38 = arith.constant 0.000000e+00 : f32
    %138 = vector.broadcast %cst_38 : f32 to vector<8x128xf32>
    %cst_39 = arith.constant 0.000000e+00 : f32
    %139 = vector.broadcast %cst_39 : f32 to vector<8x128xf32>
    %cst_40 = arith.constant 1.000000e+00 : f32
    %140 = vector.broadcast %cst_40 : f32 to vector<8x128xf32>
    %cst_41 = arith.constant 0.000000e+00 : f32
    %141 = vector.broadcast %cst_41 : f32 to vector<8x128xf32>
    %cst_42 = arith.constant 1.000000e+00 : f32
    %142 = vector.broadcast %cst_42 : f32 to vector<8x128xf32>
    %143 = arith.mulf %142, %140 : vector<8x128xf32>
    %144 = arith.addf %136, %143 : vector<8x128xf32>
    %cst_43 = arith.constant 1.000000e+00 : f32
    %145 = vector.broadcast %cst_43 : f32 to vector<8x128xf32>
    %146 = arith.mulf %145, %141 : vector<8x128xf32>
    %147 = arith.addf %137, %146 : vector<8x128xf32>
    %cst_44 = arith.constant -8.000000e-02 : f32
    %148 = vector.broadcast %cst_44 : f32 to vector<8x128xf32>
    %149 = arith.mulf %148, %32 : vector<8x128xf32>
    %150 = arith.addf %144, %149 : vector<8x128xf32>
    %cst_45 = arith.constant -8.000000e-02 : f32
    %151 = vector.broadcast %cst_45 : f32 to vector<8x128xf32>
    %152 = arith.mulf %151, %35 : vector<8x128xf32>
    %153 = arith.addf %147, %152 : vector<8x128xf32>
    %cst_46 = arith.constant -3.200000e-01 : f32
    %154 = vector.broadcast %cst_46 : f32 to vector<8x128xf32>
    %155 = arith.mulf %154, %32 : vector<8x128xf32>
    %156 = arith.addf %138, %155 : vector<8x128xf32>
    %cst_47 = arith.constant -3.200000e-01 : f32
    %157 = vector.broadcast %cst_47 : f32 to vector<8x128xf32>
    %158 = arith.mulf %157, %35 : vector<8x128xf32>
    %159 = arith.addf %139, %158 : vector<8x128xf32>
    %cst_48 = arith.constant 1.000000e+00 : f32
    %160 = vector.broadcast %cst_48 : f32 to vector<8x128xf32>
    %161 = arith.subf %160, %32 : vector<8x128xf32>
    %cst_49 = arith.constant 0.000000e+00 : f32
    %162 = vector.broadcast %cst_49 : f32 to vector<8x128xf32>
    %163 = arith.subf %162, %35 : vector<8x128xf32>
    %164 = math.absf %161 : vector<8x128xf32>
    %165 = math.absf %163 : vector<8x128xf32>
    %166 = arith.maximumf %164, %165 : vector<8x128xf32>
    %167 = tpu.reciprocal %166 {approx = true} : vector<8x128xf32> -> vector<8x128xf32>
    %168 = arith.mulf %166, %167 : vector<8x128xf32>
    %cst_50 = arith.constant 2.000000e+00 : f32
    %169 = vector.broadcast %cst_50 : f32 to vector<8x128xf32>
    %170 = arith.subf %169, %168 : vector<8x128xf32>
    %171 = arith.mulf %167, %170 : vector<8x128xf32>
    %172 = arith.mulf %161, %171 : vector<8x128xf32>
    %173 = arith.mulf %163, %171 : vector<8x128xf32>
    %174 = arith.mulf %172, %172 : vector<8x128xf32>
    %175 = arith.mulf %173, %173 : vector<8x128xf32>
    %176 = arith.addf %174, %175 : vector<8x128xf32>
    %177 = tpu.reciprocal %176 {approx = true} : vector<8x128xf32> -> vector<8x128xf32>
    %178 = arith.mulf %176, %177 : vector<8x128xf32>
    %cst_51 = arith.constant 2.000000e+00 : f32
    %179 = vector.broadcast %cst_51 : f32 to vector<8x128xf32>
    %180 = arith.subf %179, %178 : vector<8x128xf32>
    %181 = arith.mulf %177, %180 : vector<8x128xf32>
    %182 = arith.mulf %171, %172 : vector<8x128xf32>
    %183 = arith.mulf %182, %181 : vector<8x128xf32>
    %184 = arith.mulf %171, %173 : vector<8x128xf32>
    %185 = arith.mulf %184, %181 : vector<8x128xf32>
    %cst_52 = arith.constant 0.000000e+00 : f32
    %186 = vector.broadcast %cst_52 : f32 to vector<8x128xf32>
    %187 = arith.subf %186, %185 : vector<8x128xf32>
    %188 = arith.mulf %150, %183 : vector<8x128xf32>
    %189 = arith.mulf %153, %187 : vector<8x128xf32>
    %190 = arith.subf %188, %189 : vector<8x128xf32>
    %191 = arith.mulf %150, %187 : vector<8x128xf32>
    %192 = arith.mulf %153, %183 : vector<8x128xf32>
    %193 = arith.addf %191, %192 : vector<8x128xf32>
    %194 = arith.mulf %190, %190 : vector<8x128xf32>
    %195 = arith.mulf %193, %193 : vector<8x128xf32>
    %196 = arith.addf %194, %195 : vector<8x128xf32>
    %197 = math.sqrt %196 : vector<8x128xf32>
    %198 = arith.addf %197, %190 : vector<8x128xf32>
    %cst_53 = arith.constant 5.000000e-01 : f32
    %199 = vector.broadcast %cst_53 : f32 to vector<8x128xf32>
    %200 = arith.mulf %199, %198 : vector<8x128xf32>
    %cst_54 = arith.constant 0.000000e+00 : f32
    %201 = vector.broadcast %cst_54 : f32 to vector<8x128xf32>
    %202 = arith.maximumf %200, %201 : vector<8x128xf32>
    %203 = math.sqrt %202 : vector<8x128xf32>
    %cst_55 = arith.constant 0.000000e+00 : f32
    %204 = vector.broadcast %cst_55 : f32 to vector<8x128xf32>
    %205 = arith.cmpf oge, %193, %204 : vector<8x128xf32>
    %cst_56 = arith.constant 1.000000e+00 : f32
    %cst_57 = arith.constant -1.000000e+00 : f32
    %206 = vector.broadcast %cst_56 : f32 to vector<8x128xf32>
    %207 = vector.broadcast %cst_57 : f32 to vector<8x128xf32>
    %208 = arith.select %205, %206, %207 : vector<8x128xi1>, vector<8x128xf32>
    %209 = arith.subf %197, %190 : vector<8x128xf32>
    %cst_58 = arith.constant 5.000000e-01 : f32
    %210 = vector.broadcast %cst_58 : f32 to vector<8x128xf32>
    %211 = arith.mulf %210, %209 : vector<8x128xf32>
    %cst_59 = arith.constant 0.000000e+00 : f32
    %212 = vector.broadcast %cst_59 : f32 to vector<8x128xf32>
    %213 = arith.maximumf %211, %212 : vector<8x128xf32>
    %214 = math.sqrt %213 : vector<8x128xf32>
    %215 = arith.mulf %208, %214 : vector<8x128xf32>
    %216 = vector.broadcast %5 : f32 to vector<8x128xf32>
    %217 = arith.mulf %132, %216 : vector<8x128xf32>
    %218 = vector.broadcast %7 : f32 to vector<8x128xf32>
    %219 = arith.mulf %135, %218 : vector<8x128xf32>
    %220 = arith.subf %217, %219 : vector<8x128xf32>
    %221 = vector.broadcast %7 : f32 to vector<8x128xf32>
    %222 = arith.mulf %132, %221 : vector<8x128xf32>
    %223 = vector.broadcast %5 : f32 to vector<8x128xf32>
    %224 = arith.mulf %135, %223 : vector<8x128xf32>
    %225 = arith.addf %222, %224 : vector<8x128xf32>
    %226 = arith.mulf %19, %19 : vector<8x128xf32>
    %227 = arith.mulf %226, %226 : vector<8x128xf32>
    %228 = tpu.reciprocal %227 {approx = true} : vector<8x128xf32> -> vector<8x128xf32>
    %229 = arith.mulf %227, %228 : vector<8x128xf32>
    %cst_60 = arith.constant 2.000000e+00 : f32
    %230 = vector.broadcast %cst_60 : f32 to vector<8x128xf32>
    %231 = arith.subf %230, %229 : vector<8x128xf32>
    %232 = arith.mulf %228, %231 : vector<8x128xf32>
    %233 = arith.mulf %232, %220 : vector<8x128xf32>
    %234 = arith.mulf %232, %225 : vector<8x128xf32>
    %cst_61 = arith.constant 1.000000e+00 : f32
    %235 = vector.broadcast %cst_61 : f32 to vector<8x128xf32>
    %236 = arith.subf %233, %235 : vector<8x128xf32>
    %237 = arith.mulf %236, %236 : vector<8x128xf32>
    %238 = arith.mulf %234, %234 : vector<8x128xf32>
    %239 = arith.addf %237, %238 : vector<8x128xf32>
    %240 = math.sqrt %239 : vector<8x128xf32>
    %241 = arith.addf %240, %236 : vector<8x128xf32>
    %cst_62 = arith.constant 5.000000e-01 : f32
    %242 = vector.broadcast %cst_62 : f32 to vector<8x128xf32>
    %243 = arith.mulf %242, %241 : vector<8x128xf32>
    %cst_63 = arith.constant 0.000000e+00 : f32
    %244 = vector.broadcast %cst_63 : f32 to vector<8x128xf32>
    %245 = arith.maximumf %243, %244 : vector<8x128xf32>
    %246 = math.sqrt %245 : vector<8x128xf32>
    %cst_64 = arith.constant 0.000000e+00 : f32
    %247 = vector.broadcast %cst_64 : f32 to vector<8x128xf32>
    %248 = arith.cmpf oge, %234, %247 : vector<8x128xf32>
    %cst_65 = arith.constant 1.000000e+00 : f32
    %cst_66 = arith.constant -1.000000e+00 : f32
    %249 = vector.broadcast %cst_65 : f32 to vector<8x128xf32>
    %250 = vector.broadcast %cst_66 : f32 to vector<8x128xf32>
    %251 = arith.select %248, %249, %250 : vector<8x128xi1>, vector<8x128xf32>
    %252 = arith.subf %240, %236 : vector<8x128xf32>
    %cst_67 = arith.constant 5.000000e-01 : f32
    %253 = vector.broadcast %cst_67 : f32 to vector<8x128xf32>
    %254 = arith.mulf %253, %252 : vector<8x128xf32>
    %cst_68 = arith.constant 0.000000e+00 : f32
    %255 = vector.broadcast %cst_68 : f32 to vector<8x128xf32>
    %256 = arith.maximumf %254, %255 : vector<8x128xf32>
    %257 = math.sqrt %256 : vector<8x128xf32>
    %258 = arith.mulf %251, %257 : vector<8x128xf32>
    %259 = math.absf %246 : vector<8x128xf32>
    %260 = math.absf %258 : vector<8x128xf32>
    %261 = arith.maximumf %259, %260 : vector<8x128xf32>
    %262 = tpu.reciprocal %261 {approx = true} : vector<8x128xf32> -> vector<8x128xf32>
    %263 = arith.mulf %261, %262 : vector<8x128xf32>
    %cst_69 = arith.constant 2.000000e+00 : f32
    %264 = vector.broadcast %cst_69 : f32 to vector<8x128xf32>
    %265 = arith.subf %264, %263 : vector<8x128xf32>
    %266 = arith.mulf %262, %265 : vector<8x128xf32>
    %267 = arith.mulf %246, %266 : vector<8x128xf32>
    %268 = arith.mulf %258, %266 : vector<8x128xf32>
    %269 = arith.mulf %267, %267 : vector<8x128xf32>
    %270 = arith.mulf %268, %268 : vector<8x128xf32>
    %271 = arith.addf %269, %270 : vector<8x128xf32>
    %272 = tpu.reciprocal %271 {approx = true} : vector<8x128xf32> -> vector<8x128xf32>
    %273 = arith.mulf %271, %272 : vector<8x128xf32>
    %cst_70 = arith.constant 2.000000e+00 : f32
    %274 = vector.broadcast %cst_70 : f32 to vector<8x128xf32>
    %275 = arith.subf %274, %273 : vector<8x128xf32>
    %276 = arith.mulf %272, %275 : vector<8x128xf32>
    %277 = arith.mulf %266, %267 : vector<8x128xf32>
    %278 = arith.mulf %277, %276 : vector<8x128xf32>
    %279 = arith.mulf %266, %268 : vector<8x128xf32>
    %280 = arith.mulf %279, %276 : vector<8x128xf32>
    %cst_71 = arith.constant 0.000000e+00 : f32
    %281 = vector.broadcast %cst_71 : f32 to vector<8x128xf32>
    %282 = arith.subf %281, %280 : vector<8x128xf32>
    %283 = arith.mulf %203, %278 : vector<8x128xf32>
    %284 = arith.mulf %215, %282 : vector<8x128xf32>
    %285 = arith.subf %283, %284 : vector<8x128xf32>
    %286 = arith.mulf %203, %282 : vector<8x128xf32>
    %287 = arith.mulf %215, %278 : vector<8x128xf32>
    %288 = arith.addf %286, %287 : vector<8x128xf32>
    %289 = arith.mulf %285, %14 : vector<8x128xf32>
    %290 = vector.shape_cast %289 : vector<8x128xf32> to vector<1x8x128xf32>
    %cst_72 = arith.constant dense<0.000000e+00> : vector<1xf32>
    %291 = vector.multi_reduction <add>, %290, %cst_72 [1, 2] : vector<1x8x128xf32> to vector<1xf32>
    %292 = vector.shape_cast %291 : vector<1xf32> to vector<1x1x1xf32>
    %293 = vector.extract %292[0, 0, 0] : f32 from vector<1x1x1xf32>
    %294 = arith.mulf %288, %14 : vector<8x128xf32>
    %295 = vector.shape_cast %294 : vector<8x128xf32> to vector<1x8x128xf32>
    %cst_73 = arith.constant dense<0.000000e+00> : vector<1xf32>
    %296 = vector.multi_reduction <add>, %295, %cst_73 [1, 2] : vector<1x8x128xf32> to vector<1xf32>
    %297 = vector.shape_cast %296 : vector<1xf32> to vector<1x1x1xf32>
    %298 = vector.extract %297[0, 0, 0] : f32 from vector<1x1x1xf32>
    %299 = math.absf %150 : vector<8x128xf32>
    %300 = math.absf %153 : vector<8x128xf32>
    %301 = arith.maximumf %299, %300 : vector<8x128xf32>
    %302 = tpu.reciprocal %301 {approx = true} : vector<8x128xf32> -> vector<8x128xf32>
    %303 = arith.mulf %301, %302 : vector<8x128xf32>
    %cst_74 = arith.constant 2.000000e+00 : f32
    %304 = vector.broadcast %cst_74 : f32 to vector<8x128xf32>
    %305 = arith.subf %304, %303 : vector<8x128xf32>
    %306 = arith.mulf %302, %305 : vector<8x128xf32>
    %307 = arith.mulf %150, %306 : vector<8x128xf32>
    %308 = arith.mulf %153, %306 : vector<8x128xf32>
    %309 = arith.mulf %307, %307 : vector<8x128xf32>
    %310 = arith.mulf %308, %308 : vector<8x128xf32>
    %311 = arith.addf %309, %310 : vector<8x128xf32>
    %312 = tpu.reciprocal %311 {approx = true} : vector<8x128xf32> -> vector<8x128xf32>
    %313 = arith.mulf %311, %312 : vector<8x128xf32>
    %cst_75 = arith.constant 2.000000e+00 : f32
    %314 = vector.broadcast %cst_75 : f32 to vector<8x128xf32>
    %315 = arith.subf %314, %313 : vector<8x128xf32>
    %316 = arith.mulf %312, %315 : vector<8x128xf32>
    %317 = arith.mulf %306, %307 : vector<8x128xf32>
    %318 = arith.mulf %317, %316 : vector<8x128xf32>
    %319 = arith.mulf %306, %308 : vector<8x128xf32>
    %320 = arith.mulf %319, %316 : vector<8x128xf32>
    %cst_76 = arith.constant 0.000000e+00 : f32
    %321 = vector.broadcast %cst_76 : f32 to vector<8x128xf32>
    %322 = arith.subf %321, %320 : vector<8x128xf32>
    %323 = arith.mulf %156, %318 : vector<8x128xf32>
    %324 = arith.mulf %159, %322 : vector<8x128xf32>
    %325 = arith.subf %323, %324 : vector<8x128xf32>
    %326 = arith.mulf %156, %322 : vector<8x128xf32>
    %327 = arith.mulf %159, %318 : vector<8x128xf32>
    %328 = arith.addf %326, %327 : vector<8x128xf32>
    %329 = arith.mulf %32, %183 : vector<8x128xf32>
    %330 = arith.mulf %35, %187 : vector<8x128xf32>
    %331 = arith.subf %329, %330 : vector<8x128xf32>
    %332 = arith.mulf %32, %187 : vector<8x128xf32>
    %333 = arith.mulf %35, %183 : vector<8x128xf32>
    %334 = arith.addf %332, %333 : vector<8x128xf32>
    %cst_77 = arith.constant 4.000000e+00 : f32
    %335 = vector.broadcast %cst_77 : f32 to vector<8x128xf32>
    %336 = arith.mulf %335, %331 : vector<8x128xf32>
    %337 = arith.addf %336, %325 : vector<8x128xf32>
    %cst_78 = arith.constant 4.000000e+00 : f32
    %338 = vector.broadcast %cst_78 : f32 to vector<8x128xf32>
    %339 = arith.mulf %338, %334 : vector<8x128xf32>
    %340 = arith.addf %339, %328 : vector<8x128xf32>
    %cst_79 = arith.constant 2.000000e+00 : f32
    %341 = arith.subf %9, %cst_79 : f32
    %342 = vector.broadcast %341 : f32 to vector<8x128xf32>
    %343 = arith.addf %342, %337 : vector<8x128xf32>
    %344 = vector.broadcast %11 : f32 to vector<8x128xf32>
    %345 = arith.addf %344, %340 : vector<8x128xf32>
    %346 = arith.mulf %132, %343 : vector<8x128xf32>
    %347 = arith.mulf %135, %345 : vector<8x128xf32>
    %348 = arith.subf %346, %347 : vector<8x128xf32>
    %349 = arith.mulf %132, %345 : vector<8x128xf32>
    %350 = arith.mulf %135, %343 : vector<8x128xf32>
    %351 = arith.addf %349, %350 : vector<8x128xf32>
    %cst_80 = arith.constant 4.000000e+00 : f32
    %352 = vector.broadcast %cst_80 : f32 to vector<8x128xf32>
    %353 = arith.mulf %352, %120 : vector<8x128xf32>
    %354 = arith.addf %348, %353 : vector<8x128xf32>
    %cst_81 = arith.constant 4.000000e+00 : f32
    %355 = vector.broadcast %cst_81 : f32 to vector<8x128xf32>
    %356 = arith.mulf %355, %123 : vector<8x128xf32>
    %357 = arith.addf %351, %356 : vector<8x128xf32>
    %358 = vector.broadcast %5 : f32 to vector<8x128xf32>
    %359 = arith.mulf %354, %358 : vector<8x128xf32>
    %360 = vector.broadcast %7 : f32 to vector<8x128xf32>
    %361 = arith.mulf %357, %360 : vector<8x128xf32>
    %362 = arith.subf %359, %361 : vector<8x128xf32>
    %363 = vector.broadcast %7 : f32 to vector<8x128xf32>
    %364 = arith.mulf %354, %363 : vector<8x128xf32>
    %365 = vector.broadcast %5 : f32 to vector<8x128xf32>
    %366 = arith.mulf %357, %365 : vector<8x128xf32>
    %367 = arith.addf %364, %366 : vector<8x128xf32>
    %368 = arith.mulf %362, %232 : vector<8x128xf32>
    %369 = arith.mulf %367, %232 : vector<8x128xf32>
    %cst_82 = arith.constant 2.000000e+00 : f32
    %370 = vector.broadcast %cst_82 : f32 to vector<8x128xf32>
    %371 = arith.subf %368, %370 : vector<8x128xf32>
    %372 = arith.subf %371, %337 : vector<8x128xf32>
    %373 = arith.subf %369, %340 : vector<8x128xf32>
    %374 = arith.mulf %236, %246 : vector<8x128xf32>
    %375 = arith.mulf %234, %258 : vector<8x128xf32>
    %376 = arith.subf %374, %375 : vector<8x128xf32>
    %377 = arith.mulf %236, %258 : vector<8x128xf32>
    %378 = arith.mulf %234, %246 : vector<8x128xf32>
    %379 = arith.addf %377, %378 : vector<8x128xf32>
    %cst_83 = arith.constant 2.000000e+00 : f32
    %380 = vector.broadcast %cst_83 : f32 to vector<8x128xf32>
    %381 = arith.mulf %380, %203 : vector<8x128xf32>
    %cst_84 = arith.constant 2.000000e+00 : f32
    %382 = vector.broadcast %cst_84 : f32 to vector<8x128xf32>
    %383 = arith.mulf %382, %215 : vector<8x128xf32>
    %384 = math.absf %376 : vector<8x128xf32>
    %385 = math.absf %379 : vector<8x128xf32>
    %386 = arith.maximumf %384, %385 : vector<8x128xf32>
    %387 = tpu.reciprocal %386 {approx = true} : vector<8x128xf32> -> vector<8x128xf32>
    %388 = arith.mulf %386, %387 : vector<8x128xf32>
    %cst_85 = arith.constant 2.000000e+00 : f32
    %389 = vector.broadcast %cst_85 : f32 to vector<8x128xf32>
    %390 = arith.subf %389, %388 : vector<8x128xf32>
    %391 = arith.mulf %387, %390 : vector<8x128xf32>
    %392 = arith.mulf %376, %391 : vector<8x128xf32>
    %393 = arith.mulf %379, %391 : vector<8x128xf32>
    %394 = arith.mulf %392, %392 : vector<8x128xf32>
    %395 = arith.mulf %393, %393 : vector<8x128xf32>
    %396 = arith.addf %394, %395 : vector<8x128xf32>
    %397 = tpu.reciprocal %396 {approx = true} : vector<8x128xf32> -> vector<8x128xf32>
    %398 = arith.mulf %396, %397 : vector<8x128xf32>
    %cst_86 = arith.constant 2.000000e+00 : f32
    %399 = vector.broadcast %cst_86 : f32 to vector<8x128xf32>
    %400 = arith.subf %399, %398 : vector<8x128xf32>
    %401 = arith.mulf %397, %400 : vector<8x128xf32>
    %402 = arith.mulf %391, %392 : vector<8x128xf32>
    %403 = arith.mulf %402, %401 : vector<8x128xf32>
    %404 = arith.mulf %391, %393 : vector<8x128xf32>
    %405 = arith.mulf %404, %401 : vector<8x128xf32>
    %cst_87 = arith.constant 0.000000e+00 : f32
    %406 = vector.broadcast %cst_87 : f32 to vector<8x128xf32>
    %407 = arith.subf %406, %405 : vector<8x128xf32>
    %408 = arith.mulf %381, %403 : vector<8x128xf32>
    %409 = arith.mulf %383, %407 : vector<8x128xf32>
    %410 = arith.subf %408, %409 : vector<8x128xf32>
    %411 = arith.mulf %381, %407 : vector<8x128xf32>
    %412 = arith.mulf %383, %403 : vector<8x128xf32>
    %413 = arith.addf %411, %412 : vector<8x128xf32>
    %414 = arith.mulf %372, %410 : vector<8x128xf32>
    %415 = arith.mulf %373, %413 : vector<8x128xf32>
    %416 = arith.subf %414, %415 : vector<8x128xf32>
    %417 = arith.mulf %372, %413 : vector<8x128xf32>
    %418 = arith.mulf %373, %410 : vector<8x128xf32>
    %419 = arith.addf %417, %418 : vector<8x128xf32>
    %420 = arith.mulf %416, %14 : vector<8x128xf32>
    %421 = vector.shape_cast %420 : vector<8x128xf32> to vector<1x8x128xf32>
    %cst_88 = arith.constant dense<0.000000e+00> : vector<1xf32>
    %422 = vector.multi_reduction <add>, %421, %cst_88 [1, 2] : vector<1x8x128xf32> to vector<1xf32>
    %423 = vector.shape_cast %422 : vector<1xf32> to vector<1x1x1xf32>
    %424 = vector.extract %423[0, 0, 0] : f32 from vector<1x1x1xf32>
    %425 = arith.mulf %419, %14 : vector<8x128xf32>
    %426 = vector.shape_cast %425 : vector<8x128xf32> to vector<1x8x128xf32>
    %cst_89 = arith.constant dense<0.000000e+00> : vector<1xf32>
    %427 = vector.multi_reduction <add>, %426, %cst_89 [1, 2] : vector<1x8x128xf32> to vector<1xf32>
    %428 = vector.shape_cast %427 : vector<1xf32> to vector<1x1x1xf32>
    %429 = vector.extract %428[0, 0, 0] : f32 from vector<1x1x1xf32>
    %430 = tpu.iota {dimensions = array<i32: 1>} : vector<8x128xi32>
    %c0_i32 = arith.constant 0 : i32
    %431 = vector.broadcast %c0_i32 : i32 to vector<8x128xi32>
    %432 = arith.cmpi eq, %430, %431 : vector<8x128xi32>
    %c1_i32 = arith.constant 1 : i32
    %433 = vector.broadcast %c1_i32 : i32 to vector<8x128xi32>
    %434 = arith.cmpi eq, %430, %433 : vector<8x128xi32>
    %c2_i32 = arith.constant 2 : i32
    %435 = vector.broadcast %c2_i32 : i32 to vector<8x128xi32>
    %436 = arith.cmpi eq, %430, %435 : vector<8x128xi32>
    %c3_i32 = arith.constant 3 : i32
    %437 = vector.broadcast %c3_i32 : i32 to vector<8x128xi32>
    %438 = arith.cmpi eq, %430, %437 : vector<8x128xi32>
    %cst_90 = arith.constant 0.000000e+00 : f32
    %439 = vector.broadcast %429 : f32 to vector<8x128xf32>
    %440 = vector.broadcast %cst_90 : f32 to vector<8x128xf32>
    %441 = arith.select %438, %439, %440 : vector<8x128xi1>, vector<8x128xf32>
    %442 = vector.broadcast %424 : f32 to vector<8x128xf32>
    %443 = arith.select %436, %442, %441 : vector<8x128xi1>, vector<8x128xf32>
    %444 = vector.broadcast %298 : f32 to vector<8x128xf32>
    %445 = arith.select %434, %444, %443 : vector<8x128xi1>, vector<8x128xf32>
    %446 = vector.broadcast %293 : f32 to vector<8x128xf32>
    %447 = arith.select %432, %446, %445 : vector<8x128xi1>, vector<8x128xf32>
    %c0_91 = arith.constant 0 : index
    %c0_92 = arith.constant 0 : index
    %c0_93 = arith.constant 0 : index
    %448 = vector.load %arg4[%c0_91, %c0_92, %c0_93] : memref<1x8x128xf32, #tpu.memory_space<vmem>>, vector<1x8x128xf32>
    %449 = vector.shape_cast %448 : vector<1x8x128xf32> to vector<8x128xf32>
    %450 = vector.shape_cast %447 : vector<8x128xf32> to vector<1x8x128xf32>
    tpu.vector_store %arg4[%c0_91, %c0_92, %c0_93], %450 {strides = array<i32>} : memref<1x8x128xf32, #tpu.memory_space<vmem>>, vector<1x8x128xf32>,
    return
  }
  func.func @transform_0(%arg0: i32) -> (i32, i32) {
    %c0_i32 = arith.constant 0 : i32
    %c0_i32_0 = arith.constant 0 : i32
    %c0_i32_1 = arith.constant 0 : i32
    return %c0_i32, %c0_i32_0 : i32, i32
  }
  func.func @transform_1(%arg0: i32) -> (i32, i32) {
    %c0_i32 = arith.constant 0 : i32
    %c0_i32_0 = arith.constant 0 : i32
    %c0_i32_1 = arith.constant 0 : i32
    return %c0_i32, %c0_i32_0 : i32, i32
  }
  func.func @transform_2(%arg0: i32) -> (i32, i32) {
    %c0_i32 = arith.constant 0 : i32
    %c0_i32_0 = arith.constant 0 : i32
    %c0_i32_1 = arith.constant 0 : i32
    return %c0_i32, %c0_i32_0 : i32, i32
  }
  func.func @transform_3(%arg0: i32) -> (i32, i32, i32) {
    %c0_i32 = arith.constant 0 : i32
    %c0_i32_0 = arith.constant 0 : i32
    %c0_i32_1 = arith.constant 0 : i32
    return %arg0, %c0_i32, %c0_i32_0 : i32, i32, i32
  }
}

</mosaic_0001>

<llo_original>
// kernel: _lambda_.1
$region0: #{_lambda_.1}
  #allocation0 [shape = 'u32[]', space=smem, size = 0x4, offset = 0x4, fixed_abs, tag = 'smem constant byte address 0x4 - core index']
  #allocation1 [shape = 'u32[144,128]{1,0:T(1,128)}', space=vmem, size = 0x12000, scoped, tag = 'internal scratch']
  %s0 = inlined_call_operand.vmem [shape: f32[16,8], index: 0, kind: input, shape index: {}]
  %s1 = inlined_call_operand.vmem [shape: f32[8,128], index: 1, kind: input, shape index: {}]
  %s2 = inlined_call_operand.vmem [shape: f32[8,128], index: 2, kind: input, shape index: {}]
  %s3 = inlined_call_operand.hbm [shape: f32[16,8,128], index: 3, kind: output, shape index: {}]
  %s4 = sld [smem:[#allocation0]]
  $region49: #{_lambda_.1} parent=0
    _
  %s6 = ssub.s32 1, %s4
  %s7 = scalar_select 0, %s6, %s4
  $region1: #{_lambda_.1} parent=0
    #allocation2 [shape = 'u8[8192]{0}', space=smem, size = 0x2000, scoped, tag = 'input window, operand 0, single buffered']
    #allocation3 [shape = 's32[2]{0}', space=sflag, size = 0x8, scoped, tag = 'scoped memory for _lambda_.1']
    #allocation4 [shape = 's32[2]{0}', space=sflag, size = 0x8, scoped, tag = 'scoped memory for _lambda_.1']
    #allocation5 [shape = 'u8[8192]{0}', space=vmem, size = 0x2000, scoped, tag = 'output window, operand 0']
    %8 = vsyncpa [#allocation4], 0
    %9 = vsyncpa [#allocation3], 0
    %s10 = scalar_lea.sflag [#allocation3], 1
    %11 = vsyncpa %s10, 0
    loop: start=0, step=1, limit=18
    $region2: #{_lambda_.1} parent=1 // loop_pre_header
      _
    $region3: #{_lambda_.1} parent=1 // loop_header
      %s13 = sphi 0, %s17
      %p14 = scmp.ge.s32.totalorder %s13, 18
      %s21 = sphi 0, %s21
      %s23 = sphi 0, %s21
      %s24 = sphi 0, %s23
      %s38 = sphi 0, %s24
      %s42 = sphi 0, %s42
      %s44 = sphi 0, %s42
      %s45 = sphi 0, %s44
      %s59 = sphi 0, %s45
      %s63 = sphi 0, %s63
      %s65 = sphi 0, %s63
      %s66 = sphi 0, %s65
      %s80 = sphi 0, %s66
      %s86 = sphi 0, %s88
      %s89 = sphi 0, %s86
      %s90 = sphi 0, %s89
      %s106 = sphi 0, %s90
    $region4: #{_lambda_.1} parent=1 // loop_header_branch
      %16 = sbr.rel (%p14) target = $region8
    $region5: #{_lambda_.1} parent=1 // loop_body
      %s18 = ssub.s32 %s13, 1
      %s19 = ssub.s32 %s13, 2
      %s20 = sadd.s32 %s13, 1
      %s22 = sadd.s32 %s21, 1
      %p25 = scmp.eq.s32.totalorder %s13, 15
      %p26 = scmp.ne.s32.totalorder %s21, %s23
      %p27 = scmp.eq.s32.totalorder %s13, 0
      %p28 = por %p26, %p27
      %p29 = scmp.ne.s32.totalorder %s21, %s23
      %p30 = scmp.eq.s32.totalorder %s18, 15
      %p31 = por %p29, %p30
      %p32 = scmp.ne.s32.totalorder %s23, %s24
      %p33 = scmp.eq.s32.totalorder %s18, 0
      %p34 = por %p32, %p33
      %p35 = scmp.ne.s32.totalorder %s23, %s24
      %p36 = scmp.eq.s32.totalorder %s19, 15
      %p37 = por %p35, %p36
      %p39 = scmp.ne.s32.totalorder %s24, %s38
      %p40 = scmp.eq.s32.totalorder %s19, 0
      %p41 = por %p39, %p40
      %s43 = sadd.s32 %s42, 1
      %p46 = scmp.eq.s32.totalorder %s13, 15
      %p47 = scmp.ne.s32.totalorder %s42, %s44
      %p48 = scmp.eq.s32.totalorder %s13, 0
      %p49 = por %p47, %p48
      %p50 = scmp.ne.s32.totalorder %s42, %s44
      %p51 = scmp.eq.s32.totalorder %s18, 15
      %p52 = por %p50, %p51
      %p53 = scmp.ne.s32.totalorder %s44, %s45
      %p54 = scmp.eq.s32.totalorder %s18, 0
      %p55 = por %p53, %p54
      %p56 = scmp.ne.s32.totalorder %s44, %s45
      %p57 = scmp.eq.s32.totalorder %s19, 15
      %p58 = por %p56, %p57
      %p60 = scmp.ne.s32.totalorder %s45, %s59
      %p61 = scmp.eq.s32.totalorder %s19, 0
      %p62 = por %p60, %p61
      %s64 = sadd.s32 %s63, 1
      %p67 = scmp.eq.s32.totalorder %s13, 15
      %p68 = scmp.ne.s32.totalorder %s63, %s65
      %p69 = scmp.eq.s32.totalorder %s13, 0
      %p70 = por %p68, %p69
      %p71 = scmp.ne.s32.totalorder %s63, %s65
      %p72 = scmp.eq.s32.totalorder %s18, 15
      %p73 = por %p71, %p72
      %p74 = scmp.ne.s32.totalorder %s65, %s66
      %p75 = scmp.eq.s32.totalorder %s18, 0
      %p76 = por %p74, %p75
      %p77 = scmp.ne.s32.totalorder %s65, %s66
      %p78 = scmp.eq.s32.totalorder %s19, 15
      %p79 = por %p77, %p78
      %p81 = scmp.ne.s32.totalorder %s66, %s80
      %p82 = scmp.eq.s32.totalorder %s19, 0
      %p83 = por %p81, %p82
      %s84 = ssub.s32 %s13, %s20
      %p85 = scmp.eq.s32.totalorder %s84, 0
      %s87 = sadd.s32 %s86, 1
      %s88 = scalar_select %p85, %s86, %s87
      %p91 = pneg %p85
      %p92 = scmp.eq.s32.totalorder %s13, 15
      %p93 = por %p91, %p92
      %p94 = scmp.ne.s32.totalorder %s86, %s89
      %p95 = scmp.eq.s32.totalorder %s13, 0
      %p96 = por %p94, %p95
      %p97 = scmp.ne.s32.totalorder %s86, %s89
      %p98 = scmp.eq.s32.totalorder %s18, 15
      %p99 = por %p97, %p98
      %p100 = scmp.ne.s32.totalorder %s89, %s90
      %p101 = scmp.eq.s32.totalorder %s18, 0
      %p102 = por %p100, %p101
      %p103 = scmp.ne.s32.totalorder %s89, %s90
      %p104 = scmp.eq.s32.totalorder %s19, 15
      %p105 = por %p103, %p104
      %p107 = scmp.ne.s32.totalorder %s90, %s106
      %p108 = scmp.eq.s32.totalorder %s19, 0
      %p109 = por %p107, %p108
      %p110 = scmp.le.s32.totalorder 1, %s13
      %p111 = scmp.lt.s32.totalorder %s13, 17
      %p112 = pnand %p110, %p111
      %p113 = pneg %p112
      // Predicated region
      $region9: #{_lambda_.1} parent=5 // pred_check
        _
      $region10: #{_lambda_.1} parent=5 // pred_check_branch
        %115 = sbr.rel (%p112) target = $region12
      $region11: #{_lambda_.1} parent=5 // pred_region
        %s116 = ssub.s32 %s13, 1
        // Predicated region
        $region13: #{_lambda_.1} parent=11 // pred_check
          %p117 = pneg %p34
        $region14: #{_lambda_.1} parent=11 // pred_check_branch
          %119 = sbr.rel (%p117) target = $region16
        $region15: #{_lambda_.1} parent=11 // pred_region
          %s121 = ssub.s32 256, 256
          %122 = vsyncadd [#allocation4], %s121
          %s123 = sshll.u32 %s0, 4
          %s124 = int_to_ptr.vmem [resolvable:$true] %s123
          %129 = dma.vmem_to_smem %s124, 256, [#allocation2], [#allocation4], 128, 128, 8
        $region16: #{_lambda_.1} parent=11 // pred_fallthru
          _
        // Predicated region
        $region17: #{_lambda_.1} parent=11 // pred_check
          %p130 = pneg %p55
        $region18: #{_lambda_.1} parent=11 // pred_check_branch
          %132 = sbr.rel (%p130) target = $region20
        $region19: #{_lambda_.1} parent=11 // pred_region
          _
        $region20: #{_lambda_.1} parent=11 // pred_fallthru
          _
        // Predicated region
        $region21: #{_lambda_.1} parent=11 // pred_check
          %p133 = pneg %p76
        $region22: #{_lambda_.1} parent=11 // pred_check_branch
          %135 = sbr.rel (%p133) target = $region24
        $region23: #{_lambda_.1} parent=11 // pred_region
          _
        $region24: #{_lambda_.1} parent=11 // pred_fallthru
          _
      $region12: #{_lambda_.1} parent=5 // pred_fallthru
        _
      %p136 = scmp.lt.s32.totalorder %s13, 16
      // Predicated region
      $region25: #{_lambda_.1} parent=5 // pred_check
        %p137 = pneg %p136
      $region26: #{_lambda_.1} parent=5 // pred_check_branch
        %139 = sbr.rel (%p137) target = $region28
      $region27: #{_lambda_.1} parent=5 // pred_region
        _
      $region28: #{_lambda_.1} parent=5 // pred_fallthru
        _
      %p140 = scmp.le.s32.totalorder 1, %s13
      %p141 = scmp.lt.s32.totalorder %s13, 17
      %p142 = pnand %p140, %p141
      %p143 = pneg %p142
      // Predicated region
      $region29: #{_lambda_.1} parent=5 // pred_check
        _
      $region30: #{_lambda_.1} parent=5 // pred_check_branch
        %145 = sbr.rel (%p142) target = $region32
      $region31: #{_lambda_.1} parent=5 // pred_region
        %s146 = ssub.s32 %s13, 1
        // Predicated region
        $region33: #{_lambda_.1} parent=31 // pred_check
          %p147 = pneg %p34
        $region34: #{_lambda_.1} parent=31 // pred_check_branch
          %149 = sbr.rel (%p147) target = $region36
        $region35: #{_lambda_.1} parent=31 // pred_region
          %150 = dma.done [#allocation4], 256
        $region36: #{_lambda_.1} parent=31 // pred_fallthru
          _
        %151 = sfence
        %p152 = pneg %p34
        %p153 = pneg %p31
        %p154 = pneg %p55
        %p155 = pneg %p52
        %p156 = pneg %p76
        %p157 = pneg %p73
        %p158 = pneg %p102
        %p159 = pneg %p99
        %s160 = sand.u32 %s89, 1
        %s161 = scalar_lea.sflag [#allocation3], %s160
        %s162 = sand.u32 %s89, 1
        %s163 = smul.addr %s162, 8
        %s164 = scalar_lea.vmem [#allocation5], %s163
        %s165 = smul.u32 %s18, 128
        %s166 = sld [smem:[#allocation2 + %s165]]
        %s167 = sadd.s32 %s165, 1
        %s168 = sld [smem:[#allocation2 + %s167]]
        %s169 = sadd.s32 %s165, 2
        %s170 = sld [smem:[#allocation2 + %s169]]
        %s171 = sadd.s32 %s165, 3
        %s172 = sld [smem:[#allocation2 + %s171]]
        %s173 = sadd.s32 %s165, 4
        %s174 = sld [smem:[#allocation2 + %s173]]
        %s175 = sadd.s32 %s165, 5
        %s176 = sld [smem:[#allocation2 + %s175]]
        %v177 = vld [vmem:[%s1] sm:$0xff]
        %v178 = vld [vmem:[%s2] sm:$0xff]
        %v179 = vmul.f32 %v177, %v178
        %v180 = vsub.f32 1.0, %v177
        %v181 = vadd.f32 %v177, 1.0
        %v182 = vmul.f32 %v180, %v181
        %v183 = vstv %s166
        %v184 = vmul.f32 %v183, %v182
        %v185 = vstv %s168
        %v186 = vmul.f32 %v185, %v182
        %v187 = vmul.f32 %v184, %v184
        %v188 = vmul.f32 %v186, %v186
        %v189 = vsub.f32 %v187, %v188
        %v190 = vmul.f32 %v184, %v186
        %v191 = vadd.f32 %v190, %v190
        %v192 = vmul.f32 %v189, %v189
        %v193 = vmul.f32 %v191, %v191
        %v194 = vsub.f32 %v192, %v193
        %v195 = vmul.f32 %v189, %v191
        %v196 = vadd.f32 %v195, %v195
        %v197 = vadd.f32 %v187, %v188
        %v198 = vlog2.pop %v197
        %v199 = vmul.f32 %v198, 0.6931472
        %v200 = vmul.f32 %v199, 0.5
        %v201 = vand.u32 2147483647, %v184
        %v202 = vand.u32 2147483647, %v186
        %vm203 = vcmp.gt.f32.partialorder %v202, %v201
        %v204 = vsel %vm203, %v201, %v202
        %v205 = vsel %vm203, %v202, %v201
        %v206 = vmax.f32 %v205, 1e-30
        %v207 = vrcp.pop %v206
        %v208 = vmul.f32 %v206, %v207
        %v209 = vsub.f32 2.0, %v208
        %v210 = vmul.f32 %v207, %v209
        %v211 = vmul.f32 %v204, %v210
        %vm212 = vcmp.gt.f32.partialorder %v211, 0.41421357
        %v213 = vsub.f32 %v211, 1.0
        %v214 = vadd.f32 %v211, 1.0
        %v215 = vrcp.pop %v214
        %v216 = vmul.f32 %v214, %v215
        %v217 = vsub.f32 2.0, %v216
        %v218 = vmul.f32 %v215, %v217
        %v219 = vmul.f32 %v213, %v218
        %v220 = vsel %vm212, %v219, %v211
        %v221 = vmul.f32 %v220, %v220
        %v222 = vmul.f32 %v221, 0.080537446
        %v223 = vsub.f32 %v222, 0.13877685
        %v224 = vmul.f32 %v223, %v221
        %v225 = vadd.f32 %v224, 0.19977711
        %v226 = vmul.f32 %v225, %v221
        %v227 = vsub.f32 %v226, 0.3333295
        %v228 = vmul.f32 %v227, %v221
        %v229 = vmul.f32 %v228, %v220
        %v230 = vadd.f32 %v229, %v220
        %v231 = vadd.f32 %v230, 0.7853982
        %v232 = vsel %vm212, %v231, %v230
        %v233 = vsub.f32 1.5707964, %v232
        %v234 = vsel %vm203, %v233, %v232
        %vm235 = vcmp.lt.f32.partialorder %v184, 0.0
        %v236 = vsub.f32 3.1415927, %v234
        %v237 = vsel %vm235, %v236, %v234
        %vm238 = vcmp.lt.f32.partialorder %v186, 0.0
        %v239 = vsub.f32 0.0, %v237
        %v240 = vsel %vm238, %v239, %v237
        %v241 = vsub.f32 %v194, 1.0
        %v242 = vmul.f32 %v241, -1.0
        %v243 = vadd.f32 %v242, 0.0
        %v244 = vmul.f32 %v196, -1.0
        %v245 = vadd.f32 %v244, 0.0
        %v246 = vmul.f32 %v194, 0.12
        %v247 = vadd.f32 %v246, 1.0
        %v248 = vmul.f32 %v196, 0.12
        %v249 = vadd.f32 %v248, 0.0
        %v250 = vmul.f32 %v194, %v200
        %v251 = vmul.f32 %v196, %v240
        %v252 = vsub.f32 %v250, %v251
        %v253 = vmul.f32 %v194, %v240
        %v254 = vmul.f32 %v196, %v200
        %v255 = vadd.f32 %v253, %v254
        %v256 = vmul.f32 %v252, 0.48
        %v257 = vsub.f32 %v243, %v256
        %v258 = vmul.f32 %v255, 0.48
        %v259 = vsub.f32 %v245, %v258
        %v260 = vmul.f32 %v194, -0.08
        %v261 = vadd.f32 %v260, 1.0
        %v262 = vmul.f32 %v196, -0.08
        %v263 = vadd.f32 %v262, 0.0
        %v264 = vmul.f32 %v194, -0.32
        %v265 = vadd.f32 %v264, 0.0
        %v266 = vmul.f32 %v196, -0.32
        %v267 = vadd.f32 %v266, 0.0
        %v268 = vsub.f32 1.0, %v194
        %v269 = vsub.f32 0.0, %v196
        %v270 = vand.u32 2147483647, %v268
        %v271 = vand.u32 2147483647, %v269
        %v272 = vmax.f32 %v270, %v271
        %v273 = vrcp.pop %v272
        %v274 = vmul.f32 %v272, %v273
        %v275 = vsub.f32 2.0, %v274
        %v276 = vmul.f32 %v273, %v275
        %v277 = vmul.f32 %v268, %v276
        %v278 = vmul.f32 %v269, %v276
        %v279 = vmul.f32 %v277, %v277
        %v280 = vmul.f32 %v278, %v278
        %v281 = vadd.f32 %v279, %v280
        %v282 = vrcp.pop %v281
        %v283 = vmul.f32 %v281, %v282
        %v284 = vsub.f32 2.0, %v283
        %v285 = vmul.f32 %v282, %v284
        %v286 = vmul.f32 %v276, %v277
        %v287 = vmul.f32 %v286, %v285
        %v288 = vmul.f32 %v276, %v278
        %v289 = vmul.f32 %v288, %v285
        %v290 = vsub.f32 0.0, %v289
        %v291 = vmul.f32 %v261, %v287
        %v292 = vmul.f32 %v263, %v290
        %v293 = vsub.f32 %v291, %v292
        %v294 = vmul.f32 %v261, %v290
        %v295 = vmul.f32 %v263, %v287
        %v296 = vadd.f32 %v294, %v295
        %v297 = vmul.f32 %v293, %v293
        %v298 = vmul.f32 %v296, %v296
        %v299 = vadd.f32 %v297, %v298
        %v300 = vrsqrt.pop %v299
        %v301 = vmul.f32 %v299, %v300
        %vm302 = vcmp.eq.f32.partialorder %v299, inf
        %v303 = vsel %vm302, %v299, %v301
        %vm304 = vcmp.eq.f32.partialorder %v299, 0.0
        %v305 = vand.u32 %v299, 2147483648
        %v306 = vsel %vm304, %v305, %v303
        %v307 = vadd.f32 %v306, %v293
        %v308 = vmul.f32 %v307, 0.5
        %v309 = vmax.f32 %v308, 0.0
        %v310 = vrsqrt.pop %v309
        %v311 = vmul.f32 %v309, %v310
        %vm312 = vcmp.eq.f32.partialorder %v309, inf
        %v313 = vsel %vm312, %v309, %v311
        %vm314 = vcmp.eq.f32.partialorder %v309, 0.0
        %v315 = vand.u32 %v309, 2147483648
        %v316 = vsel %vm314, %v315, %v313
        %vm317 = vcmp.ge.f32.partialorder %v296, 0.0
        %v318 = vsel %vm317, 1.0, -1.0
        %v319 = vsub.f32 %v306, %v293
        %v320 = vmul.f32 %v319, 0.5
        %v321 = vmax.f32 %v320, 0.0
        %v322 = vrsqrt.pop %v321
        %v323 = vmul.f32 %v321, %v322
        %vm324 = vcmp.eq.f32.partialorder %v321, inf
        %v325 = vsel %vm324, %v321, %v323
        %vm326 = vcmp.eq.f32.partialorder %v321, 0.0
        %v327 = vand.u32 %v321, 2147483648
        %v328 = vsel %vm326, %v327, %v325
        %v329 = vmul.f32 %v318, %v328
        %v330 = vstv %s170
        %v331 = vmul.f32 %v257, %v330
        %v332 = vstv %s172
        %v333 = vmul.f32 %v259, %v332
        %v334 = vsub.f32 %v331, %v333
        %v335 = vmul.f32 %v257, %v332
        %v336 = vmul.f32 %v259, %v330
        %v337 = vadd.f32 %v335, %v336
        %v338 = vmul.f32 %v182, %v182
        %v339 = vmul.f32 %v338, %v338
        %v340 = vrcp.pop %v339
        %v341 = vmul.f32 %v339, %v340
        %v342 = vsub.f32 2.0, %v341
        %v343 = vmul.f32 %v340, %v342
        %v344 = vmul.f32 %v343, %v334
        %v345 = vmul.f32 %v343, %v337
        %v346 = vsub.f32 %v344, 1.0
        %v347 = vmul.f32 %v346, %v346
        %v348 = vmul.f32 %v345, %v345
        %v349 = vadd.f32 %v347, %v348
        %v350 = vrsqrt.pop %v349
        %v351 = vmul.f32 %v349, %v350
        %vm352 = vcmp.eq.f32.partialorder %v349, inf
        %v353 = vsel %vm352, %v349, %v351
        %vm354 = vcmp.eq.f32.partialorder %v349, 0.0
        %v355 = vand.u32 %v349, 2147483648
        %v356 = vsel %vm354, %v355, %v353
        %v357 = vadd.f32 %v356, %v346
        %v358 = vmul.f32 %v357, 0.5
        %v359 = vmax.f32 %v358, 0.0
        %v360 = vrsqrt.pop %v359
        %v361 = vmul.f32 %v359, %v360
        %vm362 = vcmp.eq.f32.partialorder %v359, inf
        %v363 = vsel %vm362, %v359, %v361
        %vm364 = vcmp.eq.f32.partialorder %v359, 0.0
        %v365 = vand.u32 %v359, 2147483648
        %v366 = vsel %vm364, %v365, %v363
        %vm367 = vcmp.ge.f32.partialorder %v345, 0.0
        %v368 = vsel %vm367, 1.0, -1.0
        %v369 = vsub.f32 %v356, %v346
        %v370 = vmul.f32 %v369, 0.5
        %v371 = vmax.f32 %v370, 0.0
        %v372 = vrsqrt.pop %v371
        %v373 = vmul.f32 %v371, %v372
        %vm374 = vcmp.eq.f32.partialorder %v371, inf
        %v375 = vsel %vm374, %v371, %v373
        %vm376 = vcmp.eq.f32.partialorder %v371, 0.0
        %v377 = vand.u32 %v371, 2147483648
        %v378 = vsel %vm376, %v377, %v375
        %v379 = vmul.f32 %v368, %v378
        %v380 = vand.u32 2147483647, %v366
        %v381 = vand.u32 2147483647, %v379
        %v382 = vmax.f32 %v380, %v381
        %v383 = vrcp.pop %v382
        %v384 = vmul.f32 %v382, %v383
        %v385 = vsub.f32 2.0, %v384
        %v386 = vmul.f32 %v383, %v385
        %v387 = vmul.f32 %v366, %v386
        %v388 = vmul.f32 %v379, %v386
        %v389 = vmul.f32 %v387, %v387
        %v390 = vmul.f32 %v388, %v388
        %v391 = vadd.f32 %v389, %v390
        %v392 = vrcp.pop %v391
        %v393 = vmul.f32 %v391, %v392
        %v394 = vsub.f32 2.0, %v393
        %v395 = vmul.f32 %v392, %v394
        %v396 = vmul.f32 %v386, %v387
        %v397 = vmul.f32 %v396, %v395
        %v398 = vmul.f32 %v386, %v388
        %v399 = vmul.f32 %v398, %v395
        %v400 = vsub.f32 0.0, %v399
        %v401 = vmul.f32 %v316, %v397
        %v402 = vmul.f32 %v329, %v400
        %v403 = vsub.f32 %v401, %v402
        %v404 = vmul.f32 %v316, %v400
        %v405 = vmul.f32 %v329, %v397
        %v406 = vadd.f32 %v404, %v405
        %v407 = vmul.f32 %v403, %v179
        %408 = vadd.xlane.f32.xlu0 %v407
        %v409 = vpop.xlane.xlu0 %408
        %v410 = vrot.slane %v409, 4
        %v411 = vadd.f32 %v409, %v410
        %v412 = vrot.slane %v411, 2
        %v413 = vadd.f32 %v411, %v412
        %v414 = vrot.slane %v413, 1
        %v415 = vadd.f32 %v413, %v414
        %s416 = vtos %v415
        %v417 = vmul.f32 %v406, %v179
        %418 = vadd.xlane.f32.xlu0 %v417
        %v419 = vpop.xlane.xlu0 %418
        %v420 = vrot.slane %v419, 4
        %v421 = vadd.f32 %v419, %v420
        %v422 = vrot.slane %v421, 2
        %v423 = vadd.f32 %v421, %v422
        %v424 = vrot.slane %v423, 1
        %v425 = vadd.f32 %v423, %v424
        %s426 = vtos %v425
        %v427 = vand.u32 2147483647, %v261
        %v428 = vand.u32 2147483647, %v263
        %v429 = vmax.f32 %v427, %v428
        %v430 = vrcp.pop %v429
        %v431 = vmul.f32 %v429, %v430
        %v432 = vsub.f32 2.0, %v431
        %v433 = vmul.f32 %v430, %v432
        %v434 = vmul.f32 %v261, %v433
        %v435 = vmul.f32 %v263, %v433
        %v436 = vmul.f32 %v434, %v434
        %v437 = vmul.f32 %v435, %v435
        %v438 = vadd.f32 %v436, %v437
        %v439 = vrcp.pop %v438
        %v440 = vmul.f32 %v438, %v439
        %v441 = vsub.f32 2.0, %v440
        %v442 = vmul.f32 %v439, %v441
        %v443 = vmul.f32 %v433, %v434
        %v444 = vmul.f32 %v443, %v442
        %v445 = vmul.f32 %v433, %v435
        %v446 = vmul.f32 %v445, %v442
        %v447 = vsub.f32 0.0, %v446
        %v448 = vmul.f32 %v265, %v444
        %v449 = vmul.f32 %v267, %v447
        %v450 = vsub.f32 %v448, %v449
        %v451 = vmul.f32 %v265, %v447
        %v452 = vmul.f32 %v267, %v444
        %v453 = vadd.f32 %v451, %v452
        %v454 = vmul.f32 %v194, %v287
        %v455 = vmul.f32 %v196, %v290
        %v456 = vsub.f32 %v454, %v455
        %v457 = vmul.f32 %v194, %v290
        %v458 = vmul.f32 %v196, %v287
        %v459 = vadd.f32 %v457, %v458
        %v460 = vmul.f32 %v456, 4.0
        %v461 = vadd.f32 %v460, %v450
        %v462 = vmul.f32 %v459, 4.0
        %v463 = vadd.f32 %v462, %v453
        %s464 = ssub.f32 %s174, 2.0
        %v465 = vstv %s464
        %v466 = vadd.f32 %v465, %v461
        %v467 = vstv %s176
        %v468 = vadd.f32 %v467, %v463
        %v469 = vmul.f32 %v257, %v466
        %v470 = vmul.f32 %v259, %v468
        %v471 = vsub.f32 %v469, %v470
        %v472 = vmul.f32 %v257, %v468
        %v473 = vmul.f32 %v259, %v466
        %v474 = vadd.f32 %v472, %v473
        %v475 = vmul.f32 %v247, 4.0
        %v476 = vadd.f32 %v471, %v475
        %v477 = vmul.f32 %v249, 4.0
        %v478 = vadd.f32 %v474, %v477
        %v479 = vmul.f32 %v476, %v330
        %v480 = vmul.f32 %v478, %v332
        %v481 = vsub.f32 %v479, %v480
        %v482 = vmul.f32 %v476, %v332
        %v483 = vmul.f32 %v478, %v330
        %v484 = vadd.f32 %v482, %v483
        %v485 = vmul.f32 %v481, %v343
        %v486 = vmul.f32 %v484, %v343
        %v487 = vsub.f32 %v485, 2.0
        %v488 = vsub.f32 %v487, %v461
        %v489 = vsub.f32 %v486, %v463
        %v490 = vmul.f32 %v346, %v366
        %v491 = vmul.f32 %v345, %v379
        %v492 = vsub.f32 %v490, %v491
        %v493 = vmul.f32 %v346, %v379
        %v494 = vmul.f32 %v345, %v366
        %v495 = vadd.f32 %v493, %v494
        %v496 = vmul.f32 %v316, 2.0
        %v497 = vmul.f32 %v329, 2.0
        %v498 = vand.u32 2147483647, %v492
        %v499 = vand.u32 2147483647, %v495
        %v500 = vmax.f32 %v498, %v499
        %v501 = vrcp.pop %v500
        %v502 = vmul.f32 %v500, %v501
        %v503 = vsub.f32 2.0, %v502
        %v504 = vmul.f32 %v501, %v503
        %v505 = vmul.f32 %v492, %v504
        %v506 = vmul.f32 %v495, %v504
        %v507 = vmul.f32 %v505, %v505
        %v508 = vmul.f32 %v506, %v506
        %v509 = vadd.f32 %v507, %v508
        %v510 = vrcp.pop %v509
        %v511 = vmul.f32 %v509, %v510
        %v512 = vsub.f32 2.0, %v511
        %v513 = vmul.f32 %v510, %v512
        %v514 = vmul.f32 %v504, %v505
        %v515 = vmul.f32 %v514, %v513
        %v516 = vmul.f32 %v504, %v506
        %v517 = vmul.f32 %v516, %v513
        %v518 = vsub.f32 0.0, %v517
        %v519 = vmul.f32 %v496, %v515
        %v520 = vmul.f32 %v497, %v518
        %v521 = vsub.f32 %v519, %v520
        %v522 = vmul.f32 %v496, %v518
        %v523 = vmul.f32 %v497, %v515
        %v524 = vadd.f32 %v522, %v523
        %v525 = vmul.f32 %v488, %v521
        %v526 = vmul.f32 %v489, %v524
        %v527 = vsub.f32 %v525, %v526
        %v528 = vmul.f32 %v488, %v524
        %v529 = vmul.f32 %v489, %v521
        %v530 = vadd.f32 %v528, %v529
        %v531 = vmul.f32 %v527, %v179
        %532 = vadd.xlane.f32.xlu0 %v531
        %v533 = vpop.xlane.xlu0 %532
        %v534 = vrot.slane %v533, 4
        %v535 = vadd.f32 %v533, %v534
        %v536 = vrot.slane %v535, 2
        %v537 = vadd.f32 %v535, %v536
        %v538 = vrot.slane %v537, 1
        %v539 = vadd.f32 %v537, %v538
        %s540 = vtos %v539
        %v541 = vmul.f32 %v530, %v179
        %542 = vadd.xlane.f32.xlu0 %v541
        %v543 = vpop.xlane.xlu0 %542
        %v544 = vrot.slane %v543, 4
        %v545 = vadd.f32 %v543, %v544
        %v546 = vrot.slane %v545, 2
        %v547 = vadd.f32 %v545, %v546
        %v548 = vrot.slane %v547, 1
        %v549 = vadd.f32 %v547, %v548
        %s550 = vtos %v549
        %v551 = vlaneseq
        %v552 = vand.u32 %v551, 127
        %vm553 = vcmp.eq.s32.totalorder %v552, 0
        %vm554 = vcmp.eq.s32.totalorder %v552, 1
        %vm555 = vcmp.eq.s32.totalorder %v552, 2
        %vm556 = vcmp.eq.s32.totalorder %v552, 3
        %v557 = vstv %s550
        %v558 = vsel %vm556, %v557, 0.0
        %v559 = vstv %s540
        %v560 = vsel %vm555, %v559, %v558
        %v561 = vstv %s426
        %v562 = vsel %vm554, %v561, %v560
        %v563 = vstv %s416
        %v564 = vsel %vm553, %v563, %v562
        %565 = vst [vmem:[%s164] sm:$0xff] %v564
        %s566 = sand.u32 %s89, 1
        %s567 = scalar_lea.sflag [#allocation3], %s566
        %s568 = sand.u32 %s89, 1
        %s569 = smul.addr %s568, 8
        %s570 = scalar_lea.vmem [#allocation5], %s569
        // Predicated region
        $region37: #{_lambda_.1} parent=31 // pred_check
          %p571 = pneg %p99
        $region38: #{_lambda_.1} parent=31 // pred_check_branch
          %573 = sbr.rel (%p571) target = $region40
        $region39: #{_lambda_.1} parent=31 // pred_region
          %s575 = ssub.s32 128, 128
          %576 = vsyncadd %s567, %s575
          %s577 = smul.addr %s18, 128
          %s578 = scalar_lea.hbm %s3, %s577
          %s580 = sshll.u32 %s570, 4
          %s581 = int_to_ptr.vmem [resolvable:$true] %s580
          %583 = dma.vmem_to_hbm [thread:$0]  %s581, 128, %s578, %s567
        $region40: #{_lambda_.1} parent=31 // pred_fallthru
          _
      $region32: #{_lambda_.1} parent=5 // pred_fallthru
        _
      %p584 = scmp.le.s32.totalorder 2, %s13
      // Predicated region
      $region41: #{_lambda_.1} parent=5 // pred_check
        %p585 = pneg %p584
      $region42: #{_lambda_.1} parent=5 // pred_check_branch
        %587 = sbr.rel (%p585) target = $region44
      $region43: #{_lambda_.1} parent=5 // pred_region
        %s588 = ssub.s32 %s13, 2
        // Predicated region
        $region45: #{_lambda_.1} parent=43 // pred_check
          %p589 = pneg %p105
        $region46: #{_lambda_.1} parent=43 // pred_check_branch
          %591 = sbr.rel (%p589) target = $region48
        $region47: #{_lambda_.1} parent=43 // pred_region
          %s592 = sand.u32 %s90, 1
          %s593 = scalar_lea.sflag [#allocation3], %s592
          %s594 = sand.u32 %s90, 1
          %s595 = smul.addr %s594, 8
          %s596 = scalar_lea.vmem [#allocation5], %s595
          %597 = dma.done %s593, 128
        $region48: #{_lambda_.1} parent=43 // pred_fallthru
          _
      $region44: #{_lambda_.1} parent=5 // pred_fallthru
        _
    $region6: #{_lambda_.1} parent=1 // loop_footer
      %s17 = sadd.s32 1, %s13
    $region7: #{_lambda_.1} parent=1 // loop_footer_branch
      %12 = sbr.rel target = $region3
    $region8: #{_lambda_.1} parent=1 // loop_exit
      _
    %598 = vsyncpa [#allocation3], 1
    %s599 = scalar_lea.sflag [#allocation3], 1
    %600 = vsyncpa %s599, 1
    %601 = vsyncpa [#allocation4], 1
    %s602 = scalar_lea.sflag [#allocation4], 1
    %603 = vsyncpa %s602, 1

</llo_original>
